<compile_context>
chip_gen: v7x
topology: tpu7x:2x2x1
jax: 0.10.0
libtpu: 0.0.40
codegen_flags: <defaults>
</compile_context>

<pallas_src>
import jax
import jax.numpy as jnp
from jax.experimental import pallas as pl
from jax.experimental.pallas import tpu as pltpu


# --------------------------------------------------------------------------
# Fused Pallas kernel: whole network, all feature streams, one invocation.
# --------------------------------------------------------------------------
def _make_tcn_kernel(B, F, L, Cf, kmax, num_layers):
    dilations = [2 ** i for i in range(num_layers)]
    cins = [1 if i == 0 else Cf for i in range(num_layers)]

    def kernel(x_ref, p_ref, o_ref):
        # x_ref: (1, B*F*L)      1-channel input, lane order p = (b*F + f)*L + t
        # p_ref: (P, Cf, B*F*L)  packed parameter planes (masks folded into W)
        # o_ref: (F, B, Cf, L)   module output layout
        idx = 0

        def take():
            nonlocal idx
            plane = p_ref[idx]          # (Cf, B*F*L), static index -> one load
            idx += 1
            return plane

        def causal_conv(hin, cin, d):
            # out[co,p] = bias[co,p] + sum_{j,ci} W_{j,ci}[co,p] * hin[ci, p - shift_j]
            # Wrapped / pre-sequence lanes are killed by the mask folded into W.
            acc = None
            for j in range(kmax):
                shift = (kmax - 1 - j) * d
                hj = hin if shift == 0 else pltpu.roll(hin, shift=shift, axis=1)
                for ci in range(cin):
                    term = take() * hj[ci:ci + 1, :]     # sublane-broadcast MAC
                    acc = term if acc is None else acc + term
            return acc + take()                          # conv bias plane

        h = x_ref[...]                                   # (1, B*F*L) f32
        for layer in range(num_layers):
            cin, d = cins[layer], dilations[layer]

            out = causal_conv(h, cin, d)                 # conv1 + chomp
            out = jnp.tanh(out)                          # Tanh1 (dropout == id)
            scale, off = take(), take()
            out = out * scale + off                      # BatchNorm1d (eval)

            out = causal_conv(out, Cf, d)                # conv2 + chomp
            out = jnp.tanh(out)                          # Tanh2 (dropout == id)
            scale, off = take(), take()
            out = out * scale + off                      # BatchNorm1d (eval)

            if cin != Cf:                                # 1x1 downsample residual
                res = None
                for ci in range(cin):
                    term = take() * h[ci:ci + 1, :]
                    res = term if res is None else res + term
                res = res + take()
            else:
                res = h
            h = jnp.tanh(out + res)                      # (Cf, B*F*L)

        # Write the module's (F, B, Cf, L) layout.  Channels stay on sublanes
        # and time on lanes, so each store is a plain static lane slice
        # (no sublane<->lane relayout, no wrapper transpose).
        for f in range(F):
            for b in range(B):
                start = (b * F + f) * L
                o_ref[f, b, :, :] = h[:, start:start + L]

    return kernel


def _num_planes(num_layers, Cf, kmax):
    n = 0
    for layer in range(num_layers):
        cin = 1 if layer == 0 else Cf
        n += kmax * cin + 1 + 2          # conv1 W + bias + bn1 scale/shift
        n += kmax * Cf + 1 + 2           # conv2 W + bias + bn2 scale/shift
        if cin != Cf:
            n += cin + 1                 # downsample W + bias
    return n


# --------------------------------------------------------------------------
# Wrapper: one pallas_call for the whole network.
# --------------------------------------------------------------------------
def build_tcn_forward(planes, *, B, F, L, num_filters, kmax, num_layers):
    """Returns jitted forward: x (B, F, L) -> stacked (F, B, Cf, L)."""
    Cf = num_filters
    BFL = B * F * L
    P = _num_planes(num_layers, Cf, kmax)
    assert planes.shape == (P, Cf, BFL), (planes.shape, (P, Cf, BFL))

    kernel = _make_tcn_kernel(B, F, L, Cf, kmax, num_layers)

    fused = pl.pallas_call(
        kernel,
        out_shape=jax.ShapeDtypeStruct((F, B, Cf, L), jnp.float32),
        grid=(1,),
        in_specs=[
            pl.BlockSpec((1, BFL), lambda i: (0, 0)),
            pl.BlockSpec((P, Cf, BFL), lambda i: (0, 0, 0)),
        ],
        out_specs=pl.BlockSpec((F, B, Cf, L), lambda i: (0, 0, 0, 0)),
    )

    @jax.jit
    def forward(x, planes):
        # The reference module loops over x.size(2) but indexes dim 1, which
        # implicitly requires a square input with C == L == num_features.
        assert x.shape == (B, F, L) and F == L, x.shape
        x_flat = x.reshape(1, BFL)       # contiguous flatten: free, no transpose
        return fused(x_flat, planes)     # (F, B, Cf, L)

    return forward


# --------------------------------------------------------------------------
# Parameter construction (deterministic, mirrors the torch module at init).
# --------------------------------------------------------------------------
def init_tcn_raw_params(key, num_features, num_layers, num_filters, kernel_sizes):
    """Per-feature / per-layer raw parameters (weight_norm folded, BN eval affine)."""
    Cf = num_filters
    eps = 1e-5
    bn_scale = jnp.full((Cf,), 1.0 / (1.0 + eps) ** 0.5, jnp.float32)
    bn_shift = jnp.zeros((Cf,), jnp.float32)
    raw = []
    for f in range(num_features):
        k = kernel_sizes[f]
        layers = []
        for layer in range(num_layers):
            cin = 1 if layer == 0 else Cf
            key, k1, k2, k3, k4, k5, k6 = jax.random.split(key, 7)
            b1_bound = 1.0 / (cin * k) ** 0.5        # torch Conv1d bias init
            b2_bound = 1.0 / (Cf * k) ** 0.5
            p = dict(
                w1=jax.random.normal(k1, (Cf, cin, k), jnp.float32) * 0.01,
                b1=jax.random.uniform(k2, (Cf,), jnp.float32, -b1_bound, b1_bound),
                s1=bn_scale, t1=bn_shift,
                w2=jax.random.normal(k3, (Cf, Cf, k), jnp.float32) * 0.01,
                b2=jax.random.uniform(k4, (Cf,), jnp.float32, -b2_bound, b2_bound),
                s2=bn_scale, t2=bn_shift,
            )
            if cin != Cf:                            # nn.Conv1d(cin, Cf, 1)
                bd_bound = 1.0 / cin ** 0.5
                p["wd"] = jax.random.normal(k5, (Cf, cin), jnp.float32) * 0.01
                p["bd"] = jax.random.uniform(k6, (Cf,), jnp.float32,
                                             -bd_bound, bd_bound)
            layers.append(p)
        raw.append(layers)
    return raw


def pack_planes(raw, *, B, L, num_layers, num_filters, kmax):
    """Pack all parameters into one (P, Cf, B*F*L) plane array.

    Every plane is a per-lane broadcast of per-feature values (lane order
    p = (b*F + f)*L + t).  Causal masks (t >= tap_shift) and the right-aligned
    zero taps for features with kernel_size < kmax are folded into the conv
    weight planes so the kernel needs no padding / masking ops of its own.
    """
    F = len(raw)
    Cf = num_filters
    t_idx = jnp.arange(L)
    planes = []

    def bcast(vals_fc, mask=None):                 # (F, Cf) -> (Cf, B*F*L)
        p = jnp.broadcast_to(vals_fc.T[:, None, :, None], (Cf, B, F, L))
        if mask is not None:
            p = p * mask[None, None, None, :]
        return p.reshape(Cf, B * F * L)

    def conv_planes(layer, wname, bname, cin, d):
        for j in range(kmax):
            shift = (kmax - 1 - j) * d
            mask = (t_idx >= shift).astype(jnp.float32)
            for ci in range(cin):
                vals = []
                for f in range(F):
                    w = raw[f][layer][wname]       # (Cf, cin, k_f)
                    k_f = w.shape[2]
                    jj = j - (kmax - k_f)          # right-aligned tap index
                    vals.append(w[:, ci, jj] if jj >= 0
                                else jnp.zeros((Cf,), jnp.float32))
                planes.append(bcast(jnp.stack(vals, 0), mask))
        planes.append(bcast(jnp.stack([raw[f][layer][bname] for f in range(F)], 0)))

    def affine_plane(layer, name):
        planes.append(bcast(jnp.stack([raw[f][layer][name] for f in range(F)], 0)))

    for layer in range(num_layers):
        cin = 1 if layer == 0 else Cf
        d = 2 ** layer
        conv_planes(layer, "w1", "b1", cin, d)
        affine_plane(layer, "s1"); affine_plane(layer, "t1")
        conv_planes(layer, "w2", "b2", Cf, d)
        affine_plane(layer, "s2"); affine_plane(layer, "t2")
        if cin != Cf:
            for ci in range(cin):
                planes.append(bcast(jnp.stack(
                    [raw[f][layer]["wd"][:, ci] for f in range(F)], 0)))
            planes.append(bcast(jnp.stack(
                [raw[f][layer]["bd"] for f in range(F)], 0)))
    return jnp.stack(planes, axis=0)               # (P, Cf, B*F*L)


# --------------------------------------------------------------------------
# Pure-JAX reference (independent path: per-feature loops, left zero-pad).
# --------------------------------------------------------------------------
def tcn_reference(x, raw, *, num_layers, num_filters):
    B, _, L = x.shape
    F = len(raw)
    Cf = num_filters

    def conv(hin, w, b, d):
        k = w.shape[2]
        pad = (k - 1) * d
        hp = jnp.pad(hin, ((0, 0), (0, 0), (pad, 0)))
        out = b[None, :, None]
        for j in range(k):
            out = out + jnp.einsum("oc,bcl->bol", w[:, :, j],
                                   hp[:, :, j * d: j * d + L])
        return out

    outs = []
    for f in range(F):
        h = x[:, f, :][:, None, :]                           # (B, 1, L)
        for layer in range(num_layers):
            p = raw[f][layer]
            d = 2 ** layer
            o = jnp.tanh(conv(h, p["w1"], p["b1"], d))
            o = o * p["s1"][None, :, None] + p["t1"][None, :, None]
            o = jnp.tanh(conv(o, p["w2"], p["b2"], d))
            o = o * p["s2"][None, :, None] + p["t2"][None, :, None]
            if "wd" in p:
                res = jnp.einsum("oc,bcl->bol", p["wd"], h) + p["bd"][None, :, None]
            else:
                res = h
            h = jnp.tanh(o + res)
        outs.append(h)                                       # (B, Cf, L)
    return jnp.stack(outs, axis=0)                           # (F, B, Cf, L)


if __name__ == "__main__":
    B = 2
    num_features = 8        # module loops over x.size(2) => requires C == L == F
    num_layers = 2
    num_filters = 8
    kernel_sizes = [2, 3, 2, 3, 2, 3, 2, 3]
    seq_len = num_features
    kmax = max(kernel_sizes)
    # dropout = 0.2 -> identity at inference

    key = jax.random.PRNGKey(0)
    kparams, kx = jax.random.split(key)
    raw = init_tcn_raw_params(kparams, num_features, num_layers,
                              num_filters, kernel_sizes)
    planes = pack_planes(raw, B=B, L=seq_len, num_layers=num_layers,
                         num_filters=num_filters, kmax=kmax)
    x = jax.random.normal(kx, (B, num_features, seq_len), jnp.float32)

    forward = build_tcn_forward(planes, B=B, F=num_features, L=seq_len,
                                num_filters=num_filters, kmax=kmax,
                                num_layers=num_layers)
    out = jax.block_until_ready(forward(x, planes))          # (F, B, Cf, L)

    # The reference module returns a Python list of per-feature outputs.
    outs = [out[i] for i in range(num_features)]
    expected = (B, num_filters, seq_len)
    assert len(outs) == num_features
    assert all(o.shape == expected for o in outs), [o.shape for o in outs]
    assert bool(jnp.all(jnp.isfinite(out)))

    ref = jax.jit(lambda xi: tcn_reference(xi, raw, num_layers=num_layers,
                                           num_filters=num_filters))(x)
    assert jnp.allclose(out, ref, atol=1e-3, rtol=1e-3), float(
        jnp.max(jnp.abs(out - ref)))

    print("KERNEL_OK")
</pallas_src>

<mosaic_0001>
module attributes {stable_mosaic.version = 11 : i64} {
  func.func @kernel(%arg0: i32, %arg1: memref<1x128xf32, #tpu.memory_space<vmem>>, %arg2: memref<89x8x128xf32, #tpu.memory_space<vmem>>, %arg3: memref<8x2x8x8xf32, #tpu.memory_space<vmem>>) attributes {dimension_semantics = [#tpu.dimension_semantics<arbitrary>], iteration_bounds = array<i64: 1>, scalar_prefetch = 0 : i64, scratch_operands = 0 : i64, tpu.core_type = #tpu.core_type<tc>, window_params = [{pipeline_mode = #tpu.pipeline_mode<synchronous>, transform_indices = @transform_0, window_bounds = array<i64: 1, 128>}, {pipeline_mode = #tpu.pipeline_mode<synchronous>, transform_indices = @transform_1, window_bounds = array<i64: 89, 8, 128>}, {pipeline_mode = #tpu.pipeline_mode<synchronous>, transform_indices = @transform_2, window_bounds = array<i64: 8, 2, 8, 8>}]} {
    %c0 = arith.constant 0 : index
    %c0_0 = arith.constant 0 : index
    %0 = vector.load %arg1[%c0, %c0_0] : memref<1x128xf32, #tpu.memory_space<vmem>>, vector<1x128xf32>
    %c2_i32 = arith.constant 2 : i32
    %1 = tpu.dynamic_rotate %0 by %c2_i32 dim 1 : vector<1x128xf32>, i32 -> vector<1x128xf32>
    %c0_1 = arith.constant 0 : index
    %c0_2 = arith.constant 0 : index
    %c0_3 = arith.constant 0 : index
    %2 = vector.load %arg2[%c0_1, %c0_2, %c0_3] : memref<89x8x128xf32, #tpu.memory_space<vmem>>, vector<1x8x128xf32>
    %3 = vector.shape_cast %2 : vector<1x8x128xf32> to vector<8x128xf32>
    %4 = vector.broadcast %1 : vector<1x128xf32> to vector<8x128xf32>
    %5 = arith.mulf %3, %4 : vector<8x128xf32>
    %c1_i32 = arith.constant 1 : i32
    %6 = tpu.dynamic_rotate %0 by %c1_i32 dim 1 : vector<1x128xf32>, i32 -> vector<1x128xf32>
    %c1 = arith.constant 1 : index
    %c0_4 = arith.constant 0 : index
    %c0_5 = arith.constant 0 : index
    %7 = vector.load %arg2[%c1, %c0_4, %c0_5] : memref<89x8x128xf32, #tpu.memory_space<vmem>>, vector<1x8x128xf32>
    %8 = vector.shape_cast %7 : vector<1x8x128xf32> to vector<8x128xf32>
    %9 = vector.broadcast %6 : vector<1x128xf32> to vector<8x128xf32>
    %10 = arith.mulf %8, %9 : vector<8x128xf32>
    %11 = arith.addf %5, %10 : vector<8x128xf32>
    %c2 = arith.constant 2 : index
    %c0_6 = arith.constant 0 : index
    %c0_7 = arith.constant 0 : index
    %12 = vector.load %arg2[%c2, %c0_6, %c0_7] : memref<89x8x128xf32, #tpu.memory_space<vmem>>, vector<1x8x128xf32>
    %13 = vector.shape_cast %12 : vector<1x8x128xf32> to vector<8x128xf32>
    %14 = vector.broadcast %0 : vector<1x128xf32> to vector<8x128xf32>
    %15 = arith.mulf %13, %14 : vector<8x128xf32>
    %16 = arith.addf %11, %15 : vector<8x128xf32>
    %c3 = arith.constant 3 : index
    %c0_8 = arith.constant 0 : index
    %c0_9 = arith.constant 0 : index
    %17 = vector.load %arg2[%c3, %c0_8, %c0_9] : memref<89x8x128xf32, #tpu.memory_space<vmem>>, vector<1x8x128xf32>
    %18 = vector.shape_cast %17 : vector<1x8x128xf32> to vector<8x128xf32>
    %19 = arith.addf %16, %18 : vector<8x128xf32>
    %20 = math.tanh %19 : vector<8x128xf32>
    %c4 = arith.constant 4 : index
    %c0_10 = arith.constant 0 : index
    %c0_11 = arith.constant 0 : index
    %21 = vector.load %arg2[%c4, %c0_10, %c0_11] : memref<89x8x128xf32, #tpu.memory_space<vmem>>, vector<1x8x128xf32>
    %22 = vector.shape_cast %21 : vector<1x8x128xf32> to vector<8x128xf32>
    %c5 = arith.constant 5 : index
    %c0_12 = arith.constant 0 : index
    %c0_13 = arith.constant 0 : index
    %23 = vector.load %arg2[%c5, %c0_12, %c0_13] : memref<89x8x128xf32, #tpu.memory_space<vmem>>, vector<1x8x128xf32>
    %24 = vector.shape_cast %23 : vector<1x8x128xf32> to vector<8x128xf32>
    %25 = arith.mulf %20, %22 : vector<8x128xf32>
    %26 = arith.addf %25, %24 : vector<8x128xf32>
    %c2_i32_14 = arith.constant 2 : i32
    %27 = tpu.dynamic_rotate %26 by %c2_i32_14 dim 1 : vector<8x128xf32>, i32 -> vector<8x128xf32>
    %c6 = arith.constant 6 : index
    %c0_15 = arith.constant 0 : index
    %c0_16 = arith.constant 0 : index
    %28 = vector.load %arg2[%c6, %c0_15, %c0_16] : memref<89x8x128xf32, #tpu.memory_space<vmem>>, vector<1x8x128xf32>
    %29 = vector.shape_cast %28 : vector<1x8x128xf32> to vector<8x128xf32>
    %30 = vector.extract_strided_slice %27 {offsets = [0, 0], sizes = [1, 128], strides = [1, 1]} : vector<8x128xf32> to vector<1x128xf32>
    %31 = vector.broadcast %30 : vector<1x128xf32> to vector<8x128xf32>
    %32 = arith.mulf %29, %31 : vector<8x128xf32>
    %c7 = arith.constant 7 : index
    %c0_17 = arith.constant 0 : index
    %c0_18 = arith.constant 0 : index
    %33 = vector.load %arg2[%c7, %c0_17, %c0_18] : memref<89x8x128xf32, #tpu.memory_space<vmem>>, vector<1x8x128xf32>
    %34 = vector.shape_cast %33 : vector<1x8x128xf32> to vector<8x128xf32>
    %35 = vector.extract_strided_slice %27 {offsets = [1, 0], sizes = [1, 128], strides = [1, 1]} : vector<8x128xf32> to vector<1x128xf32>
    %36 = vector.broadcast %35 : vector<1x128xf32> to vector<8x128xf32>
    %37 = arith.mulf %34, %36 : vector<8x128xf32>
    %38 = arith.addf %32, %37 : vector<8x128xf32>
    %c8 = arith.constant 8 : index
    %c0_19 = arith.constant 0 : index
    %c0_20 = arith.constant 0 : index
    %39 = vector.load %arg2[%c8, %c0_19, %c0_20] : memref<89x8x128xf32, #tpu.memory_space<vmem>>, vector<1x8x128xf32>
    %40 = vector.shape_cast %39 : vector<1x8x128xf32> to vector<8x128xf32>
    %41 = vector.extract_strided_slice %27 {offsets = [2, 0], sizes = [1, 128], strides = [1, 1]} : vector<8x128xf32> to vector<1x128xf32>
    %42 = vector.broadcast %41 : vector<1x128xf32> to vector<8x128xf32>
    %43 = arith.mulf %40, %42 : vector<8x128xf32>
    %44 = arith.addf %38, %43 : vector<8x128xf32>
    %c9 = arith.constant 9 : index
    %c0_21 = arith.constant 0 : index
    %c0_22 = arith.constant 0 : index
    %45 = vector.load %arg2[%c9, %c0_21, %c0_22] : memref<89x8x128xf32, #tpu.memory_space<vmem>>, vector<1x8x128xf32>
    %46 = vector.shape_cast %45 : vector<1x8x128xf32> to vector<8x128xf32>
    %47 = vector.extract_strided_slice %27 {offsets = [3, 0], sizes = [1, 128], strides = [1, 1]} : vector<8x128xf32> to vector<1x128xf32>
    %48 = vector.broadcast %47 : vector<1x128xf32> to vector<8x128xf32>
    %49 = arith.mulf %46, %48 : vector<8x128xf32>
    %50 = arith.addf %44, %49 : vector<8x128xf32>
    %c10 = arith.constant 10 : index
    %c0_23 = arith.constant 0 : index
    %c0_24 = arith.constant 0 : index
    %51 = vector.load %arg2[%c10, %c0_23, %c0_24] : memref<89x8x128xf32, #tpu.memory_space<vmem>>, vector<1x8x128xf32>
    %52 = vector.shape_cast %51 : vector<1x8x128xf32> to vector<8x128xf32>
    %53 = vector.extract_strided_slice %27 {offsets = [4, 0], sizes = [1, 128], strides = [1, 1]} : vector<8x128xf32> to vector<1x128xf32>
    %54 = vector.broadcast %53 : vector<1x128xf32> to vector<8x128xf32>
    %55 = arith.mulf %52, %54 : vector<8x128xf32>
    %56 = arith.addf %50, %55 : vector<8x128xf32>
    %c11 = arith.constant 11 : index
    %c0_25 = arith.constant 0 : index
    %c0_26 = arith.constant 0 : index
    %57 = vector.load %arg2[%c11, %c0_25, %c0_26] : memref<89x8x128xf32, #tpu.memory_space<vmem>>, vector<1x8x128xf32>
    %58 = vector.shape_cast %57 : vector<1x8x128xf32> to vector<8x128xf32>
    %59 = vector.extract_strided_slice %27 {offsets = [5, 0], sizes = [1, 128], strides = [1, 1]} : vector<8x128xf32> to vector<1x128xf32>
    %60 = vector.broadcast %59 : vector<1x128xf32> to vector<8x128xf32>
    %61 = arith.mulf %58, %60 : vector<8x128xf32>
    %62 = arith.addf %56, %61 : vector<8x128xf32>
    %c12 = arith.constant 12 : index
    %c0_27 = arith.constant 0 : index
    %c0_28 = arith.constant 0 : index
    %63 = vector.load %arg2[%c12, %c0_27, %c0_28] : memref<89x8x128xf32, #tpu.memory_space<vmem>>, vector<1x8x128xf32>
    %64 = vector.shape_cast %63 : vector<1x8x128xf32> to vector<8x128xf32>
    %65 = vector.extract_strided_slice %27 {offsets = [6, 0], sizes = [1, 128], strides = [1, 1]} : vector<8x128xf32> to vector<1x128xf32>
    %66 = vector.broadcast %65 : vector<1x128xf32> to vector<8x128xf32>
    %67 = arith.mulf %64, %66 : vector<8x128xf32>
    %68 = arith.addf %62, %67 : vector<8x128xf32>
    %c13 = arith.constant 13 : index
    %c0_29 = arith.constant 0 : index
    %c0_30 = arith.constant 0 : index
    %69 = vector.load %arg2[%c13, %c0_29, %c0_30] : memref<89x8x128xf32, #tpu.memory_space<vmem>>, vector<1x8x128xf32>
    %70 = vector.shape_cast %69 : vector<1x8x128xf32> to vector<8x128xf32>
    %71 = vector.extract_strided_slice %27 {offsets = [7, 0], sizes = [1, 128], strides = [1, 1]} : vector<8x128xf32> to vector<1x128xf32>
    %72 = vector.broadcast %71 : vector<1x128xf32> to vector<8x128xf32>
    %73 = arith.mulf %70, %72 : vector<8x128xf32>
    %74 = arith.addf %68, %73 : vector<8x128xf32>
    %c1_i32_31 = arith.constant 1 : i32
    %75 = tpu.dynamic_rotate %26 by %c1_i32_31 dim 1 : vector<8x128xf32>, i32 -> vector<8x128xf32>
    %c14 = arith.constant 14 : index
    %c0_32 = arith.constant 0 : index
    %c0_33 = arith.constant 0 : index
    %76 = vector.load %arg2[%c14, %c0_32, %c0_33] : memref<89x8x128xf32, #tpu.memory_space<vmem>>, vector<1x8x128xf32>
    %77 = vector.shape_cast %76 : vector<1x8x128xf32> to vector<8x128xf32>
    %78 = vector.extract_strided_slice %75 {offsets = [0, 0], sizes = [1, 128], strides = [1, 1]} : vector<8x128xf32> to vector<1x128xf32>
    %79 = vector.broadcast %78 : vector<1x128xf32> to vector<8x128xf32>
    %80 = arith.mulf %77, %79 : vector<8x128xf32>
    %81 = arith.addf %74, %80 : vector<8x128xf32>
    %c15 = arith.constant 15 : index
    %c0_34 = arith.constant 0 : index
    %c0_35 = arith.constant 0 : index
    %82 = vector.load %arg2[%c15, %c0_34, %c0_35] : memref<89x8x128xf32, #tpu.memory_space<vmem>>, vector<1x8x128xf32>
    %83 = vector.shape_cast %82 : vector<1x8x128xf32> to vector<8x128xf32>
    %84 = vector.extract_strided_slice %75 {offsets = [1, 0], sizes = [1, 128], strides = [1, 1]} : vector<8x128xf32> to vector<1x128xf32>
    %85 = vector.broadcast %84 : vector<1x128xf32> to vector<8x128xf32>
    %86 = arith.mulf %83, %85 : vector<8x128xf32>
    %87 = arith.addf %81, %86 : vector<8x128xf32>
    %c16 = arith.constant 16 : index
    %c0_36 = arith.constant 0 : index
    %c0_37 = arith.constant 0 : index
    %88 = vector.load %arg2[%c16, %c0_36, %c0_37] : memref<89x8x128xf32, #tpu.memory_space<vmem>>, vector<1x8x128xf32>
    %89 = vector.shape_cast %88 : vector<1x8x128xf32> to vector<8x128xf32>
    %90 = vector.extract_strided_slice %75 {offsets = [2, 0], sizes = [1, 128], strides = [1, 1]} : vector<8x128xf32> to vector<1x128xf32>
    %91 = vector.broadcast %90 : vector<1x128xf32> to vector<8x128xf32>
    %92 = arith.mulf %89, %91 : vector<8x128xf32>
    %93 = arith.addf %87, %92 : vector<8x128xf32>
    %c17 = arith.constant 17 : index
    %c0_38 = arith.constant 0 : index
    %c0_39 = arith.constant 0 : index
    %94 = vector.load %arg2[%c17, %c0_38, %c0_39] : memref<89x8x128xf32, #tpu.memory_space<vmem>>, vector<1x8x128xf32>
    %95 = vector.shape_cast %94 : vector<1x8x128xf32> to vector<8x128xf32>
    %96 = vector.extract_strided_slice %75 {offsets = [3, 0], sizes = [1, 128], strides = [1, 1]} : vector<8x128xf32> to vector<1x128xf32>
    %97 = vector.broadcast %96 : vector<1x128xf32> to vector<8x128xf32>
    %98 = arith.mulf %95, %97 : vector<8x128xf32>
    %99 = arith.addf %93, %98 : vector<8x128xf32>
    %c18 = arith.constant 18 : index
    %c0_40 = arith.constant 0 : index
    %c0_41 = arith.constant 0 : index
    %100 = vector.load %arg2[%c18, %c0_40, %c0_41] : memref<89x8x128xf32, #tpu.memory_space<vmem>>, vector<1x8x128xf32>
    %101 = vector.shape_cast %100 : vector<1x8x128xf32> to vector<8x128xf32>
    %102 = vector.extract_strided_slice %75 {offsets = [4, 0], sizes = [1, 128], strides = [1, 1]} : vector<8x128xf32> to vector<1x128xf32>
    %103 = vector.broadcast %102 : vector<1x128xf32> to vector<8x128xf32>
    %104 = arith.mulf %101, %103 : vector<8x128xf32>
    %105 = arith.addf %99, %104 : vector<8x128xf32>
    %c19 = arith.constant 19 : index
    %c0_42 = arith.constant 0 : index
    %c0_43 = arith.constant 0 : index
    %106 = vector.load %arg2[%c19, %c0_42, %c0_43] : memref<89x8x128xf32, #tpu.memory_space<vmem>>, vector<1x8x128xf32>
    %107 = vector.shape_cast %106 : vector<1x8x128xf32> to vector<8x128xf32>
    %108 = vector.extract_strided_slice %75 {offsets = [5, 0], sizes = [1, 128], strides = [1, 1]} : vector<8x128xf32> to vector<1x128xf32>
    %109 = vector.broadcast %108 : vector<1x128xf32> to vector<8x128xf32>
    %110 = arith.mulf %107, %109 : vector<8x128xf32>
    %111 = arith.addf %105, %110 : vector<8x128xf32>
    %c20 = arith.constant 20 : index
    %c0_44 = arith.constant 0 : index
    %c0_45 = arith.constant 0 : index
    %112 = vector.load %arg2[%c20, %c0_44, %c0_45] : memref<89x8x128xf32, #tpu.memory_space<vmem>>, vector<1x8x128xf32>
    %113 = vector.shape_cast %112 : vector<1x8x128xf32> to vector<8x128xf32>
    %114 = vector.extract_strided_slice %75 {offsets = [6, 0], sizes = [1, 128], strides = [1, 1]} : vector<8x128xf32> to vector<1x128xf32>
    %115 = vector.broadcast %114 : vector<1x128xf32> to vector<8x128xf32>
    %116 = arith.mulf %113, %115 : vector<8x128xf32>
    %117 = arith.addf %111, %116 : vector<8x128xf32>
    %c21 = arith.constant 21 : index
    %c0_46 = arith.constant 0 : index
    %c0_47 = arith.constant 0 : index
    %118 = vector.load %arg2[%c21, %c0_46, %c0_47] : memref<89x8x128xf32, #tpu.memory_space<vmem>>, vector<1x8x128xf32>
    %119 = vector.shape_cast %118 : vector<1x8x128xf32> to vector<8x128xf32>
    %120 = vector.extract_strided_slice %75 {offsets = [7, 0], sizes = [1, 128], strides = [1, 1]} : vector<8x128xf32> to vector<1x128xf32>
    %121 = vector.broadcast %120 : vector<1x128xf32> to vector<8x128xf32>
    %122 = arith.mulf %119, %121 : vector<8x128xf32>
    %123 = arith.addf %117, %122 : vector<8x128xf32>
    %c22 = arith.constant 22 : index
    %c0_48 = arith.constant 0 : index
    %c0_49 = arith.constant 0 : index
    %124 = vector.load %arg2[%c22, %c0_48, %c0_49] : memref<89x8x128xf32, #tpu.memory_space<vmem>>, vector<1x8x128xf32>
    %125 = vector.shape_cast %124 : vector<1x8x128xf32> to vector<8x128xf32>
    %126 = vector.extract_strided_slice %26 {offsets = [0, 0], sizes = [1, 128], strides = [1, 1]} : vector<8x128xf32> to vector<1x128xf32>
    %127 = vector.broadcast %126 : vector<1x128xf32> to vector<8x128xf32>
    %128 = arith.mulf %125, %127 : vector<8x128xf32>
    %129 = arith.addf %123, %128 : vector<8x128xf32>
    %c23 = arith.constant 23 : index
    %c0_50 = arith.constant 0 : index
    %c0_51 = arith.constant 0 : index
    %130 = vector.load %arg2[%c23, %c0_50, %c0_51] : memref<89x8x128xf32, #tpu.memory_space<vmem>>, vector<1x8x128xf32>
    %131 = vector.shape_cast %130 : vector<1x8x128xf32> to vector<8x128xf32>
    %132 = vector.extract_strided_slice %26 {offsets = [1, 0], sizes = [1, 128], strides = [1, 1]} : vector<8x128xf32> to vector<1x128xf32>
    %133 = vector.broadcast %132 : vector<1x128xf32> to vector<8x128xf32>
    %134 = arith.mulf %131, %133 : vector<8x128xf32>
    %135 = arith.addf %129, %134 : vector<8x128xf32>
    %c24 = arith.constant 24 : index
    %c0_52 = arith.constant 0 : index
    %c0_53 = arith.constant 0 : index
    %136 = vector.load %arg2[%c24, %c0_52, %c0_53] : memref<89x8x128xf32, #tpu.memory_space<vmem>>, vector<1x8x128xf32>
    %137 = vector.shape_cast %136 : vector<1x8x128xf32> to vector<8x128xf32>
    %138 = vector.extract_strided_slice %26 {offsets = [2, 0], sizes = [1, 128], strides = [1, 1]} : vector<8x128xf32> to vector<1x128xf32>
    %139 = vector.broadcast %138 : vector<1x128xf32> to vector<8x128xf32>
    %140 = arith.mulf %137, %139 : vector<8x128xf32>
    %141 = arith.addf %135, %140 : vector<8x128xf32>
    %c25 = arith.constant 25 : index
    %c0_54 = arith.constant 0 : index
    %c0_55 = arith.constant 0 : index
    %142 = vector.load %arg2[%c25, %c0_54, %c0_55] : memref<89x8x128xf32, #tpu.memory_space<vmem>>, vector<1x8x128xf32>
    %143 = vector.shape_cast %142 : vector<1x8x128xf32> to vector<8x128xf32>
    %144 = vector.extract_strided_slice %26 {offsets = [3, 0], sizes = [1, 128], strides = [1, 1]} : vector<8x128xf32> to vector<1x128xf32>
    %145 = vector.broadcast %144 : vector<1x128xf32> to vector<8x128xf32>
    %146 = arith.mulf %143, %145 : vector<8x128xf32>
    %147 = arith.addf %141, %146 : vector<8x128xf32>
    %c26 = arith.constant 26 : index
    %c0_56 = arith.constant 0 : index
    %c0_57 = arith.constant 0 : index
    %148 = vector.load %arg2[%c26, %c0_56, %c0_57] : memref<89x8x128xf32, #tpu.memory_space<vmem>>, vector<1x8x128xf32>
    %149 = vector.shape_cast %148 : vector<1x8x128xf32> to vector<8x128xf32>
    %150 = vector.extract_strided_slice %26 {offsets = [4, 0], sizes = [1, 128], strides = [1, 1]} : vector<8x128xf32> to vector<1x128xf32>
    %151 = vector.broadcast %150 : vector<1x128xf32> to vector<8x128xf32>
    %152 = arith.mulf %149, %151 : vector<8x128xf32>
    %153 = arith.addf %147, %152 : vector<8x128xf32>
    %c27 = arith.constant 27 : index
    %c0_58 = arith.constant 0 : index
    %c0_59 = arith.constant 0 : index
    %154 = vector.load %arg2[%c27, %c0_58, %c0_59] : memref<89x8x128xf32, #tpu.memory_space<vmem>>, vector<1x8x128xf32>
    %155 = vector.shape_cast %154 : vector<1x8x128xf32> to vector<8x128xf32>
    %156 = vector.extract_strided_slice %26 {offsets = [5, 0], sizes = [1, 128], strides = [1, 1]} : vector<8x128xf32> to vector<1x128xf32>
    %157 = vector.broadcast %156 : vector<1x128xf32> to vector<8x128xf32>
    %158 = arith.mulf %155, %157 : vector<8x128xf32>
    %159 = arith.addf %153, %158 : vector<8x128xf32>
    %c28 = arith.constant 28 : index
    %c0_60 = arith.constant 0 : index
    %c0_61 = arith.constant 0 : index
    %160 = vector.load %arg2[%c28, %c0_60, %c0_61] : memref<89x8x128xf32, #tpu.memory_space<vmem>>, vector<1x8x128xf32>
    %161 = vector.shape_cast %160 : vector<1x8x128xf32> to vector<8x128xf32>
    %162 = vector.extract_strided_slice %26 {offsets = [6, 0], sizes = [1, 128], strides = [1, 1]} : vector<8x128xf32> to vector<1x128xf32>
    %163 = vector.broadcast %162 : vector<1x128xf32> to vector<8x128xf32>
    %164 = arith.mulf %161, %163 : vector<8x128xf32>
    %165 = arith.addf %159, %164 : vector<8x128xf32>
    %c29 = arith.constant 29 : index
    %c0_62 = arith.constant 0 : index
    %c0_63 = arith.constant 0 : index
    %166 = vector.load %arg2[%c29, %c0_62, %c0_63] : memref<89x8x128xf32, #tpu.memory_space<vmem>>, vector<1x8x128xf32>
    %167 = vector.shape_cast %166 : vector<1x8x128xf32> to vector<8x128xf32>
    %168 = vector.extract_strided_slice %26 {offsets = [7, 0], sizes = [1, 128], strides = [1, 1]} : vector<8x128xf32> to vector<1x128xf32>
    %169 = vector.broadcast %168 : vector<1x128xf32> to vector<8x128xf32>
    %170 = arith.mulf %167, %169 : vector<8x128xf32>
    %171 = arith.addf %165, %170 : vector<8x128xf32>
    %c30 = arith.constant 30 : index
    %c0_64 = arith.constant 0 : index
    %c0_65 = arith.constant 0 : index
    %172 = vector.load %arg2[%c30, %c0_64, %c0_65] : memref<89x8x128xf32, #tpu.memory_space<vmem>>, vector<1x8x128xf32>
    %173 = vector.shape_cast %172 : vector<1x8x128xf32> to vector<8x128xf32>
    %174 = arith.addf %171, %173 : vector<8x128xf32>
    %175 = math.tanh %174 : vector<8x128xf32>
    %c31 = arith.constant 31 : index
    %c0_66 = arith.constant 0 : index
    %c0_67 = arith.constant 0 : index
    %176 = vector.load %arg2[%c31, %c0_66, %c0_67] : memref<89x8x128xf32, #tpu.memory_space<vmem>>, vector<1x8x128xf32>
    %177 = vector.shape_cast %176 : vector<1x8x128xf32> to vector<8x128xf32>
    %c32 = arith.constant 32 : index
    %c0_68 = arith.constant 0 : index
    %c0_69 = arith.constant 0 : index
    %178 = vector.load %arg2[%c32, %c0_68, %c0_69] : memref<89x8x128xf32, #tpu.memory_space<vmem>>, vector<1x8x128xf32>
    %179 = vector.shape_cast %178 : vector<1x8x128xf32> to vector<8x128xf32>
    %180 = arith.mulf %175, %177 : vector<8x128xf32>
    %181 = arith.addf %180, %179 : vector<8x128xf32>
    %c33 = arith.constant 33 : index
    %c0_70 = arith.constant 0 : index
    %c0_71 = arith.constant 0 : index
    %182 = vector.load %arg2[%c33, %c0_70, %c0_71] : memref<89x8x128xf32, #tpu.memory_space<vmem>>, vector<1x8x128xf32>
    %183 = vector.shape_cast %182 : vector<1x8x128xf32> to vector<8x128xf32>
    %184 = vector.broadcast %0 : vector<1x128xf32> to vector<8x128xf32>
    %185 = arith.mulf %183, %184 : vector<8x128xf32>
    %c34 = arith.constant 34 : index
    %c0_72 = arith.constant 0 : index
    %c0_73 = arith.constant 0 : index
    %186 = vector.load %arg2[%c34, %c0_72, %c0_73] : memref<89x8x128xf32, #tpu.memory_space<vmem>>, vector<1x8x128xf32>
    %187 = vector.shape_cast %186 : vector<1x8x128xf32> to vector<8x128xf32>
    %188 = arith.addf %185, %187 : vector<8x128xf32>
    %189 = arith.addf %181, %188 : vector<8x128xf32>
    %190 = math.tanh %189 : vector<8x128xf32>
    %c4_i32 = arith.constant 4 : i32
    %191 = tpu.dynamic_rotate %190 by %c4_i32 dim 1 : vector<8x128xf32>, i32 -> vector<8x128xf32>
    %c35 = arith.constant 35 : index
    %c0_74 = arith.constant 0 : index
    %c0_75 = arith.constant 0 : index
    %192 = vector.load %arg2[%c35, %c0_74, %c0_75] : memref<89x8x128xf32, #tpu.memory_space<vmem>>, vector<1x8x128xf32>
    %193 = vector.shape_cast %192 : vector<1x8x128xf32> to vector<8x128xf32>
    %194 = vector.extract_strided_slice %191 {offsets = [0, 0], sizes = [1, 128], strides = [1, 1]} : vector<8x128xf32> to vector<1x128xf32>
    %195 = vector.broadcast %194 : vector<1x128xf32> to vector<8x128xf32>
    %196 = arith.mulf %193, %195 : vector<8x128xf32>
    %c36 = arith.constant 36 : index
    %c0_76 = arith.constant 0 : index
    %c0_77 = arith.constant 0 : index
    %197 = vector.load %arg2[%c36, %c0_76, %c0_77] : memref<89x8x128xf32, #tpu.memory_space<vmem>>, vector<1x8x128xf32>
    %198 = vector.shape_cast %197 : vector<1x8x128xf32> to vector<8x128xf32>
    %199 = vector.extract_strided_slice %191 {offsets = [1, 0], sizes = [1, 128], strides = [1, 1]} : vector<8x128xf32> to vector<1x128xf32>
    %200 = vector.broadcast %199 : vector<1x128xf32> to vector<8x128xf32>
    %201 = arith.mulf %198, %200 : vector<8x128xf32>
    %202 = arith.addf %196, %201 : vector<8x128xf32>
    %c37 = arith.constant 37 : index
    %c0_78 = arith.constant 0 : index
    %c0_79 = arith.constant 0 : index
    %203 = vector.load %arg2[%c37, %c0_78, %c0_79] : memref<89x8x128xf32, #tpu.memory_space<vmem>>, vector<1x8x128xf32>
    %204 = vector.shape_cast %203 : vector<1x8x128xf32> to vector<8x128xf32>
    %205 = vector.extract_strided_slice %191 {offsets = [2, 0], sizes = [1, 128], strides = [1, 1]} : vector<8x128xf32> to vector<1x128xf32>
    %206 = vector.broadcast %205 : vector<1x128xf32> to vector<8x128xf32>
    %207 = arith.mulf %204, %206 : vector<8x128xf32>
    %208 = arith.addf %202, %207 : vector<8x128xf32>
    %c38 = arith.constant 38 : index
    %c0_80 = arith.constant 0 : index
    %c0_81 = arith.constant 0 : index
    %209 = vector.load %arg2[%c38, %c0_80, %c0_81] : memref<89x8x128xf32, #tpu.memory_space<vmem>>, vector<1x8x128xf32>
    %210 = vector.shape_cast %209 : vector<1x8x128xf32> to vector<8x128xf32>
    %211 = vector.extract_strided_slice %191 {offsets = [3, 0], sizes = [1, 128], strides = [1, 1]} : vector<8x128xf32> to vector<1x128xf32>
    %212 = vector.broadcast %211 : vector<1x128xf32> to vector<8x128xf32>
    %213 = arith.mulf %210, %212 : vector<8x128xf32>
    %214 = arith.addf %208, %213 : vector<8x128xf32>
    %c39 = arith.constant 39 : index
    %c0_82 = arith.constant 0 : index
    %c0_83 = arith.constant 0 : index
    %215 = vector.load %arg2[%c39, %c0_82, %c0_83] : memref<89x8x128xf32, #tpu.memory_space<vmem>>, vector<1x8x128xf32>
    %216 = vector.shape_cast %215 : vector<1x8x128xf32> to vector<8x128xf32>
    %217 = vector.extract_strided_slice %191 {offsets = [4, 0], sizes = [1, 128], strides = [1, 1]} : vector<8x128xf32> to vector<1x128xf32>
    %218 = vector.broadcast %217 : vector<1x128xf32> to vector<8x128xf32>
    %219 = arith.mulf %216, %218 : vector<8x128xf32>
    %220 = arith.addf %214, %219 : vector<8x128xf32>
    %c40 = arith.constant 40 : index
    %c0_84 = arith.constant 0 : index
    %c0_85 = arith.constant 0 : index
    %221 = vector.load %arg2[%c40, %c0_84, %c0_85] : memref<89x8x128xf32, #tpu.memory_space<vmem>>, vector<1x8x128xf32>
    %222 = vector.shape_cast %221 : vector<1x8x128xf32> to vector<8x128xf32>
    %223 = vector.extract_strided_slice %191 {offsets = [5, 0], sizes = [1, 128], strides = [1, 1]} : vector<8x128xf32> to vector<1x128xf32>
    %224 = vector.broadcast %223 : vector<1x128xf32> to vector<8x128xf32>
    %225 = arith.mulf %222, %224 : vector<8x128xf32>
    %226 = arith.addf %220, %225 : vector<8x128xf32>
    %c41 = arith.constant 41 : index
    %c0_86 = arith.constant 0 : index
    %c0_87 = arith.constant 0 : index
    %227 = vector.load %arg2[%c41, %c0_86, %c0_87] : memref<89x8x128xf32, #tpu.memory_space<vmem>>, vector<1x8x128xf32>
    %228 = vector.shape_cast %227 : vector<1x8x128xf32> to vector<8x128xf32>
    %229 = vector.extract_strided_slice %191 {offsets = [6, 0], sizes = [1, 128], strides = [1, 1]} : vector<8x128xf32> to vector<1x128xf32>
    %230 = vector.broadcast %229 : vector<1x128xf32> to vector<8x128xf32>
    %231 = arith.mulf %228, %230 : vector<8x128xf32>
    %232 = arith.addf %226, %231 : vector<8x128xf32>
    %c42 = arith.constant 42 : index
    %c0_88 = arith.constant 0 : index
    %c0_89 = arith.constant 0 : index
    %233 = vector.load %arg2[%c42, %c0_88, %c0_89] : memref<89x8x128xf32, #tpu.memory_space<vmem>>, vector<1x8x128xf32>
    %234 = vector.shape_cast %233 : vector<1x8x128xf32> to vector<8x128xf32>
    %235 = vector.extract_strided_slice %191 {offsets = [7, 0], sizes = [1, 128], strides = [1, 1]} : vector<8x128xf32> to vector<1x128xf32>
    %236 = vector.broadcast %235 : vector<1x128xf32> to vector<8x128xf32>
    %237 = arith.mulf %234, %236 : vector<8x128xf32>
    %238 = arith.addf %232, %237 : vector<8x128xf32>
    %c2_i32_90 = arith.constant 2 : i32
    %239 = tpu.dynamic_rotate %190 by %c2_i32_90 dim 1 : vector<8x128xf32>, i32 -> vector<8x128xf32>
    %c43 = arith.constant 43 : index
    %c0_91 = arith.constant 0 : index
    %c0_92 = arith.constant 0 : index
    %240 = vector.load %arg2[%c43, %c0_91, %c0_92] : memref<89x8x128xf32, #tpu.memory_space<vmem>>, vector<1x8x128xf32>
    %241 = vector.shape_cast %240 : vector<1x8x128xf32> to vector<8x128xf32>
    %242 = vector.extract_strided_slice %239 {offsets = [0, 0], sizes = [1, 128], strides = [1, 1]} : vector<8x128xf32> to vector<1x128xf32>
    %243 = vector.broadcast %242 : vector<1x128xf32> to vector<8x128xf32>
    %244 = arith.mulf %241, %243 : vector<8x128xf32>
    %245 = arith.addf %238, %244 : vector<8x128xf32>
    %c44 = arith.constant 44 : index
    %c0_93 = arith.constant 0 : index
    %c0_94 = arith.constant 0 : index
    %246 = vector.load %arg2[%c44, %c0_93, %c0_94] : memref<89x8x128xf32, #tpu.memory_space<vmem>>, vector<1x8x128xf32>
    %247 = vector.shape_cast %246 : vector<1x8x128xf32> to vector<8x128xf32>
    %248 = vector.extract_strided_slice %239 {offsets = [1, 0], sizes = [1, 128], strides = [1, 1]} : vector<8x128xf32> to vector<1x128xf32>
    %249 = vector.broadcast %248 : vector<1x128xf32> to vector<8x128xf32>
    %250 = arith.mulf %247, %249 : vector<8x128xf32>
    %251 = arith.addf %245, %250 : vector<8x128xf32>
    %c45 = arith.constant 45 : index
    %c0_95 = arith.constant 0 : index
    %c0_96 = arith.constant 0 : index
    %252 = vector.load %arg2[%c45, %c0_95, %c0_96] : memref<89x8x128xf32, #tpu.memory_space<vmem>>, vector<1x8x128xf32>
    %253 = vector.shape_cast %252 : vector<1x8x128xf32> to vector<8x128xf32>
    %254 = vector.extract_strided_slice %239 {offsets = [2, 0], sizes = [1, 128], strides = [1, 1]} : vector<8x128xf32> to vector<1x128xf32>
    %255 = vector.broadcast %254 : vector<1x128xf32> to vector<8x128xf32>
    %256 = arith.mulf %253, %255 : vector<8x128xf32>
    %257 = arith.addf %251, %256 : vector<8x128xf32>
    %c46 = arith.constant 46 : index
    %c0_97 = arith.constant 0 : index
    %c0_98 = arith.constant 0 : index
    %258 = vector.load %arg2[%c46, %c0_97, %c0_98] : memref<89x8x128xf32, #tpu.memory_space<vmem>>, vector<1x8x128xf32>
    %259 = vector.shape_cast %258 : vector<1x8x128xf32> to vector<8x128xf32>
    %260 = vector.extract_strided_slice %239 {offsets = [3, 0], sizes = [1, 128], strides = [1, 1]} : vector<8x128xf32> to vector<1x128xf32>
    %261 = vector.broadcast %260 : vector<1x128xf32> to vector<8x128xf32>
    %262 = arith.mulf %259, %261 : vector<8x128xf32>
    %263 = arith.addf %257, %262 : vector<8x128xf32>
    %c47 = arith.constant 47 : index
    %c0_99 = arith.constant 0 : index
    %c0_100 = arith.constant 0 : index
    %264 = vector.load %arg2[%c47, %c0_99, %c0_100] : memref<89x8x128xf32, #tpu.memory_space<vmem>>, vector<1x8x128xf32>
    %265 = vector.shape_cast %264 : vector<1x8x128xf32> to vector<8x128xf32>
    %266 = vector.extract_strided_slice %239 {offsets = [4, 0], sizes = [1, 128], strides = [1, 1]} : vector<8x128xf32> to vector<1x128xf32>
    %267 = vector.broadcast %266 : vector<1x128xf32> to vector<8x128xf32>
    %268 = arith.mulf %265, %267 : vector<8x128xf32>
    %269 = arith.addf %263, %268 : vector<8x128xf32>
    %c48 = arith.constant 48 : index
    %c0_101 = arith.constant 0 : index
    %c0_102 = arith.constant 0 : index
    %270 = vector.load %arg2[%c48, %c0_101, %c0_102] : memref<89x8x128xf32, #tpu.memory_space<vmem>>, vector<1x8x128xf32>
    %271 = vector.shape_cast %270 : vector<1x8x128xf32> to vector<8x128xf32>
    %272 = vector.extract_strided_slice %239 {offsets = [5, 0], sizes = [1, 128], strides = [1, 1]} : vector<8x128xf32> to vector<1x128xf32>
    %273 = vector.broadcast %272 : vector<1x128xf32> to vector<8x128xf32>
    %274 = arith.mulf %271, %273 : vector<8x128xf32>
    %275 = arith.addf %269, %274 : vector<8x128xf32>
    %c49 = arith.constant 49 : index
    %c0_103 = arith.constant 0 : index
    %c0_104 = arith.constant 0 : index
    %276 = vector.load %arg2[%c49, %c0_103, %c0_104] : memref<89x8x128xf32, #tpu.memory_space<vmem>>, vector<1x8x128xf32>
    %277 = vector.shape_cast %276 : vector<1x8x128xf32> to vector<8x128xf32>
    %278 = vector.extract_strided_slice %239 {offsets = [6, 0], sizes = [1, 128], strides = [1, 1]} : vector<8x128xf32> to vector<1x128xf32>
    %279 = vector.broadcast %278 : vector<1x128xf32> to vector<8x128xf32>
    %280 = arith.mulf %277, %279 : vector<8x128xf32>
    %281 = arith.addf %275, %280 : vector<8x128xf32>
    %c50 = arith.constant 50 : index
    %c0_105 = arith.constant 0 : index
    %c0_106 = arith.constant 0 : index
    %282 = vector.load %arg2[%c50, %c0_105, %c0_106] : memref<89x8x128xf32, #tpu.memory_space<vmem>>, vector<1x8x128xf32>
    %283 = vector.shape_cast %282 : vector<1x8x128xf32> to vector<8x128xf32>
    %284 = vector.extract_strided_slice %239 {offsets = [7, 0], sizes = [1, 128], strides = [1, 1]} : vector<8x128xf32> to vector<1x128xf32>
    %285 = vector.broadcast %284 : vector<1x128xf32> to vector<8x128xf32>
    %286 = arith.mulf %283, %285 : vector<8x128xf32>
    %287 = arith.addf %281, %286 : vector<8x128xf32>
    %c51 = arith.constant 51 : index
    %c0_107 = arith.constant 0 : index
    %c0_108 = arith.constant 0 : index
    %288 = vector.load %arg2[%c51, %c0_107, %c0_108] : memref<89x8x128xf32, #tpu.memory_space<vmem>>, vector<1x8x128xf32>
    %289 = vector.shape_cast %288 : vector<1x8x128xf32> to vector<8x128xf32>
    %290 = vector.extract_strided_slice %190 {offsets = [0, 0], sizes = [1, 128], strides = [1, 1]} : vector<8x128xf32> to vector<1x128xf32>
    %291 = vector.broadcast %290 : vector<1x128xf32> to vector<8x128xf32>
    %292 = arith.mulf %289, %291 : vector<8x128xf32>
    %293 = arith.addf %287, %292 : vector<8x128xf32>
    %c52 = arith.constant 52 : index
    %c0_109 = arith.constant 0 : index
    %c0_110 = arith.constant 0 : index
    %294 = vector.load %arg2[%c52, %c0_109, %c0_110] : memref<89x8x128xf32, #tpu.memory_space<vmem>>, vector<1x8x128xf32>
    %295 = vector.shape_cast %294 : vector<1x8x128xf32> to vector<8x128xf32>
    %296 = vector.extract_strided_slice %190 {offsets = [1, 0], sizes = [1, 128], strides = [1, 1]} : vector<8x128xf32> to vector<1x128xf32>
    %297 = vector.broadcast %296 : vector<1x128xf32> to vector<8x128xf32>
    %298 = arith.mulf %295, %297 : vector<8x128xf32>
    %299 = arith.addf %293, %298 : vector<8x128xf32>
    %c53 = arith.constant 53 : index
    %c0_111 = arith.constant 0 : index
    %c0_112 = arith.constant 0 : index
    %300 = vector.load %arg2[%c53, %c0_111, %c0_112] : memref<89x8x128xf32, #tpu.memory_space<vmem>>, vector<1x8x128xf32>
    %301 = vector.shape_cast %300 : vector<1x8x128xf32> to vector<8x128xf32>
    %302 = vector.extract_strided_slice %190 {offsets = [2, 0], sizes = [1, 128], strides = [1, 1]} : vector<8x128xf32> to vector<1x128xf32>
    %303 = vector.broadcast %302 : vector<1x128xf32> to vector<8x128xf32>
    %304 = arith.mulf %301, %303 : vector<8x128xf32>
    %305 = arith.addf %299, %304 : vector<8x128xf32>
    %c54 = arith.constant 54 : index
    %c0_113 = arith.constant 0 : index
    %c0_114 = arith.constant 0 : index
    %306 = vector.load %arg2[%c54, %c0_113, %c0_114] : memref<89x8x128xf32, #tpu.memory_space<vmem>>, vector<1x8x128xf32>
    %307 = vector.shape_cast %306 : vector<1x8x128xf32> to vector<8x128xf32>
    %308 = vector.extract_strided_slice %190 {offsets = [3, 0], sizes = [1, 128], strides = [1, 1]} : vector<8x128xf32> to vector<1x128xf32>
    %309 = vector.broadcast %308 : vector<1x128xf32> to vector<8x128xf32>
    %310 = arith.mulf %307, %309 : vector<8x128xf32>
    %311 = arith.addf %305, %310 : vector<8x128xf32>
    %c55 = arith.constant 55 : index
    %c0_115 = arith.constant 0 : index
    %c0_116 = arith.constant 0 : index
    %312 = vector.load %arg2[%c55, %c0_115, %c0_116] : memref<89x8x128xf32, #tpu.memory_space<vmem>>, vector<1x8x128xf32>
    %313 = vector.shape_cast %312 : vector<1x8x128xf32> to vector<8x128xf32>
    %314 = vector.extract_strided_slice %190 {offsets = [4, 0], sizes = [1, 128], strides = [1, 1]} : vector<8x128xf32> to vector<1x128xf32>
    %315 = vector.broadcast %314 : vector<1x128xf32> to vector<8x128xf32>
    %316 = arith.mulf %313, %315 : vector<8x128xf32>
    %317 = arith.addf %311, %316 : vector<8x128xf32>
    %c56 = arith.constant 56 : index
    %c0_117 = arith.constant 0 : index
    %c0_118 = arith.constant 0 : index
    %318 = vector.load %arg2[%c56, %c0_117, %c0_118] : memref<89x8x128xf32, #tpu.memory_space<vmem>>, vector<1x8x128xf32>
    %319 = vector.shape_cast %318 : vector<1x8x128xf32> to vector<8x128xf32>
    %320 = vector.extract_strided_slice %190 {offsets = [5, 0], sizes = [1, 128], strides = [1, 1]} : vector<8x128xf32> to vector<1x128xf32>
    %321 = vector.broadcast %320 : vector<1x128xf32> to vector<8x128xf32>
    %322 = arith.mulf %319, %321 : vector<8x128xf32>
    %323 = arith.addf %317, %322 : vector<8x128xf32>
    %c57 = arith.constant 57 : index
    %c0_119 = arith.constant 0 : index
    %c0_120 = arith.constant 0 : index
    %324 = vector.load %arg2[%c57, %c0_119, %c0_120] : memref<89x8x128xf32, #tpu.memory_space<vmem>>, vector<1x8x128xf32>
    %325 = vector.shape_cast %324 : vector<1x8x128xf32> to vector<8x128xf32>
    %326 = vector.extract_strided_slice %190 {offsets = [6, 0], sizes = [1, 128], strides = [1, 1]} : vector<8x128xf32> to vector<1x128xf32>
    %327 = vector.broadcast %326 : vector<1x128xf32> to vector<8x128xf32>
    %328 = arith.mulf %325, %327 : vector<8x128xf32>
    %329 = arith.addf %323, %328 : vector<8x128xf32>
    %c58 = arith.constant 58 : index
    %c0_121 = arith.constant 0 : index
    %c0_122 = arith.constant 0 : index
    %330 = vector.load %arg2[%c58, %c0_121, %c0_122] : memref<89x8x128xf32, #tpu.memory_space<vmem>>, vector<1x8x128xf32>
    %331 = vector.shape_cast %330 : vector<1x8x128xf32> to vector<8x128xf32>
    %332 = vector.extract_strided_slice %190 {offsets = [7, 0], sizes = [1, 128], strides = [1, 1]} : vector<8x128xf32> to vector<1x128xf32>
    %333 = vector.broadcast %332 : vector<1x128xf32> to vector<8x128xf32>
    %334 = arith.mulf %331, %333 : vector<8x128xf32>
    %335 = arith.addf %329, %334 : vector<8x128xf32>
    %c59 = arith.constant 59 : index
    %c0_123 = arith.constant 0 : index
    %c0_124 = arith.constant 0 : index
    %336 = vector.load %arg2[%c59, %c0_123, %c0_124] : memref<89x8x128xf32, #tpu.memory_space<vmem>>, vector<1x8x128xf32>
    %337 = vector.shape_cast %336 : vector<1x8x128xf32> to vector<8x128xf32>
    %338 = arith.addf %335, %337 : vector<8x128xf32>
    %339 = math.tanh %338 : vector<8x128xf32>
    %c60 = arith.constant 60 : index
    %c0_125 = arith.constant 0 : index
    %c0_126 = arith.constant 0 : index
    %340 = vector.load %arg2[%c60, %c0_125, %c0_126] : memref<89x8x128xf32, #tpu.memory_space<vmem>>, vector<1x8x128xf32>
    %341 = vector.shape_cast %340 : vector<1x8x128xf32> to vector<8x128xf32>
    %c61 = arith.constant 61 : index
    %c0_127 = arith.constant 0 : index
    %c0_128 = arith.constant 0 : index
    %342 = vector.load %arg2[%c61, %c0_127, %c0_128] : memref<89x8x128xf32, #tpu.memory_space<vmem>>, vector<1x8x128xf32>
    %343 = vector.shape_cast %342 : vector<1x8x128xf32> to vector<8x128xf32>
    %344 = arith.mulf %339, %341 : vector<8x128xf32>
    %345 = arith.addf %344, %343 : vector<8x128xf32>
    %c4_i32_129 = arith.constant 4 : i32
    %346 = tpu.dynamic_rotate %345 by %c4_i32_129 dim 1 : vector<8x128xf32>, i32 -> vector<8x128xf32>
    %c62 = arith.constant 62 : index
    %c0_130 = arith.constant 0 : index
    %c0_131 = arith.constant 0 : index
    %347 = vector.load %arg2[%c62, %c0_130, %c0_131] : memref<89x8x128xf32, #tpu.memory_space<vmem>>, vector<1x8x128xf32>
    %348 = vector.shape_cast %347 : vector<1x8x128xf32> to vector<8x128xf32>
    %349 = vector.extract_strided_slice %346 {offsets = [0, 0], sizes = [1, 128], strides = [1, 1]} : vector<8x128xf32> to vector<1x128xf32>
    %350 = vector.broadcast %349 : vector<1x128xf32> to vector<8x128xf32>
    %351 = arith.mulf %348, %350 : vector<8x128xf32>
    %c63 = arith.constant 63 : index
    %c0_132 = arith.constant 0 : index
    %c0_133 = arith.constant 0 : index
    %352 = vector.load %arg2[%c63, %c0_132, %c0_133] : memref<89x8x128xf32, #tpu.memory_space<vmem>>, vector<1x8x128xf32>
    %353 = vector.shape_cast %352 : vector<1x8x128xf32> to vector<8x128xf32>
    %354 = vector.extract_strided_slice %346 {offsets = [1, 0], sizes = [1, 128], strides = [1, 1]} : vector<8x128xf32> to vector<1x128xf32>
    %355 = vector.broadcast %354 : vector<1x128xf32> to vector<8x128xf32>
    %356 = arith.mulf %353, %355 : vector<8x128xf32>
    %357 = arith.addf %351, %356 : vector<8x128xf32>
    %c64 = arith.constant 64 : index
    %c0_134 = arith.constant 0 : index
    %c0_135 = arith.constant 0 : index
    %358 = vector.load %arg2[%c64, %c0_134, %c0_135] : memref<89x8x128xf32, #tpu.memory_space<vmem>>, vector<1x8x128xf32>
    %359 = vector.shape_cast %358 : vector<1x8x128xf32> to vector<8x128xf32>
    %360 = vector.extract_strided_slice %346 {offsets = [2, 0], sizes = [1, 128], strides = [1, 1]} : vector<8x128xf32> to vector<1x128xf32>
    %361 = vector.broadcast %360 : vector<1x128xf32> to vector<8x128xf32>
    %362 = arith.mulf %359, %361 : vector<8x128xf32>
    %363 = arith.addf %357, %362 : vector<8x128xf32>
    %c65 = arith.constant 65 : index
    %c0_136 = arith.constant 0 : index
    %c0_137 = arith.constant 0 : index
    %364 = vector.load %arg2[%c65, %c0_136, %c0_137] : memref<89x8x128xf32, #tpu.memory_space<vmem>>, vector<1x8x128xf32>
    %365 = vector.shape_cast %364 : vector<1x8x128xf32> to vector<8x128xf32>
    %366 = vector.extract_strided_slice %346 {offsets = [3, 0], sizes = [1, 128], strides = [1, 1]} : vector<8x128xf32> to vector<1x128xf32>
    %367 = vector.broadcast %366 : vector<1x128xf32> to vector<8x128xf32>
    %368 = arith.mulf %365, %367 : vector<8x128xf32>
    %369 = arith.addf %363, %368 : vector<8x128xf32>
    %c66 = arith.constant 66 : index
    %c0_138 = arith.constant 0 : index
    %c0_139 = arith.constant 0 : index
    %370 = vector.load %arg2[%c66, %c0_138, %c0_139] : memref<89x8x128xf32, #tpu.memory_space<vmem>>, vector<1x8x128xf32>
    %371 = vector.shape_cast %370 : vector<1x8x128xf32> to vector<8x128xf32>
    %372 = vector.extract_strided_slice %346 {offsets = [4, 0], sizes = [1, 128], strides = [1, 1]} : vector<8x128xf32> to vector<1x128xf32>
    %373 = vector.broadcast %372 : vector<1x128xf32> to vector<8x128xf32>
    %374 = arith.mulf %371, %373 : vector<8x128xf32>
    %375 = arith.addf %369, %374 : vector<8x128xf32>
    %c67 = arith.constant 67 : index
    %c0_140 = arith.constant 0 : index
    %c0_141 = arith.constant 0 : index
    %376 = vector.load %arg2[%c67, %c0_140, %c0_141] : memref<89x8x128xf32, #tpu.memory_space<vmem>>, vector<1x8x128xf32>
    %377 = vector.shape_cast %376 : vector<1x8x128xf32> to vector<8x128xf32>
    %378 = vector.extract_strided_slice %346 {offsets = [5, 0], sizes = [1, 128], strides = [1, 1]} : vector<8x128xf32> to vector<1x128xf32>
    %379 = vector.broadcast %378 : vector<1x128xf32> to vector<8x128xf32>
    %380 = arith.mulf %377, %379 : vector<8x128xf32>
    %381 = arith.addf %375, %380 : vector<8x128xf32>
    %c68 = arith.constant 68 : index
    %c0_142 = arith.constant 0 : index
    %c0_143 = arith.constant 0 : index
    %382 = vector.load %arg2[%c68, %c0_142, %c0_143] : memref<89x8x128xf32, #tpu.memory_space<vmem>>, vector<1x8x128xf32>
    %383 = vector.shape_cast %382 : vector<1x8x128xf32> to vector<8x128xf32>
    %384 = vector.extract_strided_slice %346 {offsets = [6, 0], sizes = [1, 128], strides = [1, 1]} : vector<8x128xf32> to vector<1x128xf32>
    %385 = vector.broadcast %384 : vector<1x128xf32> to vector<8x128xf32>
    %386 = arith.mulf %383, %385 : vector<8x128xf32>
    %387 = arith.addf %381, %386 : vector<8x128xf32>
    %c69 = arith.constant 69 : index
    %c0_144 = arith.constant 0 : index
    %c0_145 = arith.constant 0 : index
    %388 = vector.load %arg2[%c69, %c0_144, %c0_145] : memref<89x8x128xf32, #tpu.memory_space<vmem>>, vector<1x8x128xf32>
    %389 = vector.shape_cast %388 : vector<1x8x128xf32> to vector<8x128xf32>
    %390 = vector.extract_strided_slice %346 {offsets = [7, 0], sizes = [1, 128], strides = [1, 1]} : vector<8x128xf32> to vector<1x128xf32>
    %391 = vector.broadcast %390 : vector<1x128xf32> to vector<8x128xf32>
    %392 = arith.mulf %389, %391 : vector<8x128xf32>
    %393 = arith.addf %387, %392 : vector<8x128xf32>
    %c2_i32_146 = arith.constant 2 : i32
    %394 = tpu.dynamic_rotate %345 by %c2_i32_146 dim 1 : vector<8x128xf32>, i32 -> vector<8x128xf32>
    %c70 = arith.constant 70 : index
    %c0_147 = arith.constant 0 : index
    %c0_148 = arith.constant 0 : index
    %395 = vector.load %arg2[%c70, %c0_147, %c0_148] : memref<89x8x128xf32, #tpu.memory_space<vmem>>, vector<1x8x128xf32>
    %396 = vector.shape_cast %395 : vector<1x8x128xf32> to vector<8x128xf32>
    %397 = vector.extract_strided_slice %394 {offsets = [0, 0], sizes = [1, 128], strides = [1, 1]} : vector<8x128xf32> to vector<1x128xf32>
    %398 = vector.broadcast %397 : vector<1x128xf32> to vector<8x128xf32>
    %399 = arith.mulf %396, %398 : vector<8x128xf32>
    %400 = arith.addf %393, %399 : vector<8x128xf32>
    %c71 = arith.constant 71 : index
    %c0_149 = arith.constant 0 : index
    %c0_150 = arith.constant 0 : index
    %401 = vector.load %arg2[%c71, %c0_149, %c0_150] : memref<89x8x128xf32, #tpu.memory_space<vmem>>, vector<1x8x128xf32>
    %402 = vector.shape_cast %401 : vector<1x8x128xf32> to vector<8x128xf32>
    %403 = vector.extract_strided_slice %394 {offsets = [1, 0], sizes = [1, 128], strides = [1, 1]} : vector<8x128xf32> to vector<1x128xf32>
    %404 = vector.broadcast %403 : vector<1x128xf32> to vector<8x128xf32>
    %405 = arith.mulf %402, %404 : vector<8x128xf32>
    %406 = arith.addf %400, %405 : vector<8x128xf32>
    %c72 = arith.constant 72 : index
    %c0_151 = arith.constant 0 : index
    %c0_152 = arith.constant 0 : index
    %407 = vector.load %arg2[%c72, %c0_151, %c0_152] : memref<89x8x128xf32, #tpu.memory_space<vmem>>, vector<1x8x128xf32>
    %408 = vector.shape_cast %407 : vector<1x8x128xf32> to vector<8x128xf32>
    %409 = vector.extract_strided_slice %394 {offsets = [2, 0], sizes = [1, 128], strides = [1, 1]} : vector<8x128xf32> to vector<1x128xf32>
    %410 = vector.broadcast %409 : vector<1x128xf32> to vector<8x128xf32>
    %411 = arith.mulf %408, %410 : vector<8x128xf32>
    %412 = arith.addf %406, %411 : vector<8x128xf32>
    %c73 = arith.constant 73 : index
    %c0_153 = arith.constant 0 : index
    %c0_154 = arith.constant 0 : index
    %413 = vector.load %arg2[%c73, %c0_153, %c0_154] : memref<89x8x128xf32, #tpu.memory_space<vmem>>, vector<1x8x128xf32>
    %414 = vector.shape_cast %413 : vector<1x8x128xf32> to vector<8x128xf32>
    %415 = vector.extract_strided_slice %394 {offsets = [3, 0], sizes = [1, 128], strides = [1, 1]} : vector<8x128xf32> to vector<1x128xf32>
    %416 = vector.broadcast %415 : vector<1x128xf32> to vector<8x128xf32>
    %417 = arith.mulf %414, %416 : vector<8x128xf32>
    %418 = arith.addf %412, %417 : vector<8x128xf32>
    %c74 = arith.constant 74 : index
    %c0_155 = arith.constant 0 : index
    %c0_156 = arith.constant 0 : index
    %419 = vector.load %arg2[%c74, %c0_155, %c0_156] : memref<89x8x128xf32, #tpu.memory_space<vmem>>, vector<1x8x128xf32>
    %420 = vector.shape_cast %419 : vector<1x8x128xf32> to vector<8x128xf32>
    %421 = vector.extract_strided_slice %394 {offsets = [4, 0], sizes = [1, 128], strides = [1, 1]} : vector<8x128xf32> to vector<1x128xf32>
    %422 = vector.broadcast %421 : vector<1x128xf32> to vector<8x128xf32>
    %423 = arith.mulf %420, %422 : vector<8x128xf32>
    %424 = arith.addf %418, %423 : vector<8x128xf32>
    %c75 = arith.constant 75 : index
    %c0_157 = arith.constant 0 : index
    %c0_158 = arith.constant 0 : index
    %425 = vector.load %arg2[%c75, %c0_157, %c0_158] : memref<89x8x128xf32, #tpu.memory_space<vmem>>, vector<1x8x128xf32>
    %426 = vector.shape_cast %425 : vector<1x8x128xf32> to vector<8x128xf32>
    %427 = vector.extract_strided_slice %394 {offsets = [5, 0], sizes = [1, 128], strides = [1, 1]} : vector<8x128xf32> to vector<1x128xf32>
    %428 = vector.broadcast %427 : vector<1x128xf32> to vector<8x128xf32>
    %429 = arith.mulf %426, %428 : vector<8x128xf32>
    %430 = arith.addf %424, %429 : vector<8x128xf32>
    %c76 = arith.constant 76 : index
    %c0_159 = arith.constant 0 : index
    %c0_160 = arith.constant 0 : index
    %431 = vector.load %arg2[%c76, %c0_159, %c0_160] : memref<89x8x128xf32, #tpu.memory_space<vmem>>, vector<1x8x128xf32>
    %432 = vector.shape_cast %431 : vector<1x8x128xf32> to vector<8x128xf32>
    %433 = vector.extract_strided_slice %394 {offsets = [6, 0], sizes = [1, 128], strides = [1, 1]} : vector<8x128xf32> to vector<1x128xf32>
    %434 = vector.broadcast %433 : vector<1x128xf32> to vector<8x128xf32>
    %435 = arith.mulf %432, %434 : vector<8x128xf32>
    %436 = arith.addf %430, %435 : vector<8x128xf32>
    %c77 = arith.constant 77 : index
    %c0_161 = arith.constant 0 : index
    %c0_162 = arith.constant 0 : index
    %437 = vector.load %arg2[%c77, %c0_161, %c0_162] : memref<89x8x128xf32, #tpu.memory_space<vmem>>, vector<1x8x128xf32>
    %438 = vector.shape_cast %437 : vector<1x8x128xf32> to vector<8x128xf32>
    %439 = vector.extract_strided_slice %394 {offsets = [7, 0], sizes = [1, 128], strides = [1, 1]} : vector<8x128xf32> to vector<1x128xf32>
    %440 = vector.broadcast %439 : vector<1x128xf32> to vector<8x128xf32>
    %441 = arith.mulf %438, %440 : vector<8x128xf32>
    %442 = arith.addf %436, %441 : vector<8x128xf32>
    %c78 = arith.constant 78 : index
    %c0_163 = arith.constant 0 : index
    %c0_164 = arith.constant 0 : index
    %443 = vector.load %arg2[%c78, %c0_163, %c0_164] : memref<89x8x128xf32, #tpu.memory_space<vmem>>, vector<1x8x128xf32>
    %444 = vector.shape_cast %443 : vector<1x8x128xf32> to vector<8x128xf32>
    %445 = vector.extract_strided_slice %345 {offsets = [0, 0], sizes = [1, 128], strides = [1, 1]} : vector<8x128xf32> to vector<1x128xf32>
    %446 = vector.broadcast %445 : vector<1x128xf32> to vector<8x128xf32>
    %447 = arith.mulf %444, %446 : vector<8x128xf32>
    %448 = arith.addf %442, %447 : vector<8x128xf32>
    %c79 = arith.constant 79 : index
    %c0_165 = arith.constant 0 : index
    %c0_166 = arith.constant 0 : index
    %449 = vector.load %arg2[%c79, %c0_165, %c0_166] : memref<89x8x128xf32, #tpu.memory_space<vmem>>, vector<1x8x128xf32>
    %450 = vector.shape_cast %449 : vector<1x8x128xf32> to vector<8x128xf32>
    %451 = vector.extract_strided_slice %345 {offsets = [1, 0], sizes = [1, 128], strides = [1, 1]} : vector<8x128xf32> to vector<1x128xf32>
    %452 = vector.broadcast %451 : vector<1x128xf32> to vector<8x128xf32>
    %453 = arith.mulf %450, %452 : vector<8x128xf32>
    %454 = arith.addf %448, %453 : vector<8x128xf32>
    %c80 = arith.constant 80 : index
    %c0_167 = arith.constant 0 : index
    %c0_168 = arith.constant 0 : index
    %455 = vector.load %arg2[%c80, %c0_167, %c0_168] : memref<89x8x128xf32, #tpu.memory_space<vmem>>, vector<1x8x128xf32>
    %456 = vector.shape_cast %455 : vector<1x8x128xf32> to vector<8x128xf32>
    %457 = vector.extract_strided_slice %345 {offsets = [2, 0], sizes = [1, 128], strides = [1, 1]} : vector<8x128xf32> to vector<1x128xf32>
    %458 = vector.broadcast %457 : vector<1x128xf32> to vector<8x128xf32>
    %459 = arith.mulf %456, %458 : vector<8x128xf32>
    %460 = arith.addf %454, %459 : vector<8x128xf32>
    %c81 = arith.constant 81 : index
    %c0_169 = arith.constant 0 : index
    %c0_170 = arith.constant 0 : index
    %461 = vector.load %arg2[%c81, %c0_169, %c0_170] : memref<89x8x128xf32, #tpu.memory_space<vmem>>, vector<1x8x128xf32>
    %462 = vector.shape_cast %461 : vector<1x8x128xf32> to vector<8x128xf32>
    %463 = vector.extract_strided_slice %345 {offsets = [3, 0], sizes = [1, 128], strides = [1, 1]} : vector<8x128xf32> to vector<1x128xf32>
    %464 = vector.broadcast %463 : vector<1x128xf32> to vector<8x128xf32>
    %465 = arith.mulf %462, %464 : vector<8x128xf32>
    %466 = arith.addf %460, %465 : vector<8x128xf32>
    %c82 = arith.constant 82 : index
    %c0_171 = arith.constant 0 : index
    %c0_172 = arith.constant 0 : index
    %467 = vector.load %arg2[%c82, %c0_171, %c0_172] : memref<89x8x128xf32, #tpu.memory_space<vmem>>, vector<1x8x128xf32>
    %468 = vector.shape_cast %467 : vector<1x8x128xf32> to vector<8x128xf32>
    %469 = vector.extract_strided_slice %345 {offsets = [4, 0], sizes = [1, 128], strides = [1, 1]} : vector<8x128xf32> to vector<1x128xf32>
    %470 = vector.broadcast %469 : vector<1x128xf32> to vector<8x128xf32>
    %471 = arith.mulf %468, %470 : vector<8x128xf32>
    %472 = arith.addf %466, %471 : vector<8x128xf32>
    %c83 = arith.constant 83 : index
    %c0_173 = arith.constant 0 : index
    %c0_174 = arith.constant 0 : index
    %473 = vector.load %arg2[%c83, %c0_173, %c0_174] : memref<89x8x128xf32, #tpu.memory_space<vmem>>, vector<1x8x128xf32>
    %474 = vector.shape_cast %473 : vector<1x8x128xf32> to vector<8x128xf32>
    %475 = vector.extract_strided_slice %345 {offsets = [5, 0], sizes = [1, 128], strides = [1, 1]} : vector<8x128xf32> to vector<1x128xf32>
    %476 = vector.broadcast %475 : vector<1x128xf32> to vector<8x128xf32>
    %477 = arith.mulf %474, %476 : vector<8x128xf32>
    %478 = arith.addf %472, %477 : vector<8x128xf32>
    %c84 = arith.constant 84 : index
    %c0_175 = arith.constant 0 : index
    %c0_176 = arith.constant 0 : index
    %479 = vector.load %arg2[%c84, %c0_175, %c0_176] : memref<89x8x128xf32, #tpu.memory_space<vmem>>, vector<1x8x128xf32>
    %480 = vector.shape_cast %479 : vector<1x8x128xf32> to vector<8x128xf32>
    %481 = vector.extract_strided_slice %345 {offsets = [6, 0], sizes = [1, 128], strides = [1, 1]} : vector<8x128xf32> to vector<1x128xf32>
    %482 = vector.broadcast %481 : vector<1x128xf32> to vector<8x128xf32>
    %483 = arith.mulf %480, %482 : vector<8x128xf32>
    %484 = arith.addf %478, %483 : vector<8x128xf32>
    %c85 = arith.constant 85 : index
    %c0_177 = arith.constant 0 : index
    %c0_178 = arith.constant 0 : index
    %485 = vector.load %arg2[%c85, %c0_177, %c0_178] : memref<89x8x128xf32, #tpu.memory_space<vmem>>, vector<1x8x128xf32>
    %486 = vector.shape_cast %485 : vector<1x8x128xf32> to vector<8x128xf32>
    %487 = vector.extract_strided_slice %345 {offsets = [7, 0], sizes = [1, 128], strides = [1, 1]} : vector<8x128xf32> to vector<1x128xf32>
    %488 = vector.broadcast %487 : vector<1x128xf32> to vector<8x128xf32>
    %489 = arith.mulf %486, %488 : vector<8x128xf32>
    %490 = arith.addf %484, %489 : vector<8x128xf32>
    %c86 = arith.constant 86 : index
    %c0_179 = arith.constant 0 : index
    %c0_180 = arith.constant 0 : index
    %491 = vector.load %arg2[%c86, %c0_179, %c0_180] : memref<89x8x128xf32, #tpu.memory_space<vmem>>, vector<1x8x128xf32>
    %492 = vector.shape_cast %491 : vector<1x8x128xf32> to vector<8x128xf32>
    %493 = arith.addf %490, %492 : vector<8x128xf32>
    %494 = math.tanh %493 : vector<8x128xf32>
    %c87 = arith.constant 87 : index
    %c0_181 = arith.constant 0 : index
    %c0_182 = arith.constant 0 : index
    %495 = vector.load %arg2[%c87, %c0_181, %c0_182] : memref<89x8x128xf32, #tpu.memory_space<vmem>>, vector<1x8x128xf32>
    %496 = vector.shape_cast %495 : vector<1x8x128xf32> to vector<8x128xf32>
    %c88 = arith.constant 88 : index
    %c0_183 = arith.constant 0 : index
    %c0_184 = arith.constant 0 : index
    %497 = vector.load %arg2[%c88, %c0_183, %c0_184] : memref<89x8x128xf32, #tpu.memory_space<vmem>>, vector<1x8x128xf32>
    %498 = vector.shape_cast %497 : vector<1x8x128xf32> to vector<8x128xf32>
    %499 = arith.mulf %494, %496 : vector<8x128xf32>
    %500 = arith.addf %499, %498 : vector<8x128xf32>
    %501 = arith.addf %500, %190 : vector<8x128xf32>
    %502 = math.tanh %501 : vector<8x128xf32>
    %503 = vector.extract_strided_slice %502 {offsets = [0, 0], sizes = [8, 8], strides = [1, 1]} : vector<8x128xf32> to vector<8x8xf32>
    %c0_185 = arith.constant 0 : index
    %c0_186 = arith.constant 0 : index
    %c0_187 = arith.constant 0 : index
    %c0_188 = arith.constant 0 : index
    %504 = vector.load %arg3[%c0_185, %c0_186, %c0_187, %c0_188] : memref<8x2x8x8xf32, #tpu.memory_space<vmem>>, vector<1x1x8x8xf32>
    %505 = vector.shape_cast %504 : vector<1x1x8x8xf32> to vector<8x8xf32>
    %506 = vector.shape_cast %503 : vector<8x8xf32> to vector<1x1x8x8xf32>
    tpu.vector_store %arg3[%c0_185, %c0_186, %c0_187, %c0_188], %506 {strides = array<i32>} : memref<8x2x8x8xf32, #tpu.memory_space<vmem>>, vector<1x1x8x8xf32>,
    %507 = vector.extract_strided_slice %502 {offsets = [0, 64], sizes = [8, 8], strides = [1, 1]} : vector<8x128xf32> to vector<8x8xf32>
    %c0_189 = arith.constant 0 : index
    %c1_190 = arith.constant 1 : index
    %c0_191 = arith.constant 0 : index
    %c0_192 = arith.constant 0 : index
    %508 = vector.load %arg3[%c0_189, %c1_190, %c0_191, %c0_192] : memref<8x2x8x8xf32, #tpu.memory_space<vmem>>, vector<1x1x8x8xf32>
    %509 = vector.shape_cast %508 : vector<1x1x8x8xf32> to vector<8x8xf32>
    %510 = vector.shape_cast %507 : vector<8x8xf32> to vector<1x1x8x8xf32>
    tpu.vector_store %arg3[%c0_189, %c1_190, %c0_191, %c0_192], %510 {strides = array<i32>} : memref<8x2x8x8xf32, #tpu.memory_space<vmem>>, vector<1x1x8x8xf32>,
    %511 = vector.extract_strided_slice %502 {offsets = [0, 8], sizes = [8, 8], strides = [1, 1]} : vector<8x128xf32> to vector<8x8xf32>
    %c1_193 = arith.constant 1 : index
    %c0_194 = arith.constant 0 : index
    %c0_195 = arith.constant 0 : index
    %c0_196 = arith.constant 0 : index
    %512 = vector.load %arg3[%c1_193, %c0_194, %c0_195, %c0_196] : memref<8x2x8x8xf32, #tpu.memory_space<vmem>>, vector<1x1x8x8xf32>
    %513 = vector.shape_cast %512 : vector<1x1x8x8xf32> to vector<8x8xf32>
    %514 = vector.shape_cast %511 : vector<8x8xf32> to vector<1x1x8x8xf32>
    tpu.vector_store %arg3[%c1_193, %c0_194, %c0_195, %c0_196], %514 {strides = array<i32>} : memref<8x2x8x8xf32, #tpu.memory_space<vmem>>, vector<1x1x8x8xf32>,
    %515 = vector.extract_strided_slice %502 {offsets = [0, 72], sizes = [8, 8], strides = [1, 1]} : vector<8x128xf32> to vector<8x8xf32>
    %c1_197 = arith.constant 1 : index
    %c1_198 = arith.constant 1 : index
    %c0_199 = arith.constant 0 : index
    %c0_200 = arith.constant 0 : index
    %516 = vector.load %arg3[%c1_197, %c1_198, %c0_199, %c0_200] : memref<8x2x8x8xf32, #tpu.memory_space<vmem>>, vector<1x1x8x8xf32>
    %517 = vector.shape_cast %516 : vector<1x1x8x8xf32> to vector<8x8xf32>
    %518 = vector.shape_cast %515 : vector<8x8xf32> to vector<1x1x8x8xf32>
    tpu.vector_store %arg3[%c1_197, %c1_198, %c0_199, %c0_200], %518 {strides = array<i32>} : memref<8x2x8x8xf32, #tpu.memory_space<vmem>>, vector<1x1x8x8xf32>,
    %519 = vector.extract_strided_slice %502 {offsets = [0, 16], sizes = [8, 8], strides = [1, 1]} : vector<8x128xf32> to vector<8x8xf32>
    %c2_201 = arith.constant 2 : index
    %c0_202 = arith.constant 0 : index
    %c0_203 = arith.constant 0 : index
    %c0_204 = arith.constant 0 : index
    %520 = vector.load %arg3[%c2_201, %c0_202, %c0_203, %c0_204] : memref<8x2x8x8xf32, #tpu.memory_space<vmem>>, vector<1x1x8x8xf32>
    %521 = vector.shape_cast %520 : vector<1x1x8x8xf32> to vector<8x8xf32>
    %522 = vector.shape_cast %519 : vector<8x8xf32> to vector<1x1x8x8xf32>
    tpu.vector_store %arg3[%c2_201, %c0_202, %c0_203, %c0_204], %522 {strides = array<i32>} : memref<8x2x8x8xf32, #tpu.memory_space<vmem>>, vector<1x1x8x8xf32>,
    %523 = vector.extract_strided_slice %502 {offsets = [0, 80], sizes = [8, 8], strides = [1, 1]} : vector<8x128xf32> to vector<8x8xf32>
    %c2_205 = arith.constant 2 : index
    %c1_206 = arith.constant 1 : index
    %c0_207 = arith.constant 0 : index
    %c0_208 = arith.constant 0 : index
    %524 = vector.load %arg3[%c2_205, %c1_206, %c0_207, %c0_208] : memref<8x2x8x8xf32, #tpu.memory_space<vmem>>, vector<1x1x8x8xf32>
    %525 = vector.shape_cast %524 : vector<1x1x8x8xf32> to vector<8x8xf32>
    %526 = vector.shape_cast %523 : vector<8x8xf32> to vector<1x1x8x8xf32>
    tpu.vector_store %arg3[%c2_205, %c1_206, %c0_207, %c0_208], %526 {strides = array<i32>} : memref<8x2x8x8xf32, #tpu.memory_space<vmem>>, vector<1x1x8x8xf32>,
    %527 = vector.extract_strided_slice %502 {offsets = [0, 24], sizes = [8, 8], strides = [1, 1]} : vector<8x128xf32> to vector<8x8xf32>
    %c3_209 = arith.constant 3 : index
    %c0_210 = arith.constant 0 : index
    %c0_211 = arith.constant 0 : index
    %c0_212 = arith.constant 0 : index
    %528 = vector.load %arg3[%c3_209, %c0_210, %c0_211, %c0_212] : memref<8x2x8x8xf32, #tpu.memory_space<vmem>>, vector<1x1x8x8xf32>
    %529 = vector.shape_cast %528 : vector<1x1x8x8xf32> to vector<8x8xf32>
    %530 = vector.shape_cast %527 : vector<8x8xf32> to vector<1x1x8x8xf32>
    tpu.vector_store %arg3[%c3_209, %c0_210, %c0_211, %c0_212], %530 {strides = array<i32>} : memref<8x2x8x8xf32, #tpu.memory_space<vmem>>, vector<1x1x8x8xf32>,
    %531 = vector.extract_strided_slice %502 {offsets = [0, 88], sizes = [8, 8], strides = [1, 1]} : vector<8x128xf32> to vector<8x8xf32>
    %c3_213 = arith.constant 3 : index
    %c1_214 = arith.constant 1 : index
    %c0_215 = arith.constant 0 : index
    %c0_216 = arith.constant 0 : index
    %532 = vector.load %arg3[%c3_213, %c1_214, %c0_215, %c0_216] : memref<8x2x8x8xf32, #tpu.memory_space<vmem>>, vector<1x1x8x8xf32>
    %533 = vector.shape_cast %532 : vector<1x1x8x8xf32> to vector<8x8xf32>
    %534 = vector.shape_cast %531 : vector<8x8xf32> to vector<1x1x8x8xf32>
    tpu.vector_store %arg3[%c3_213, %c1_214, %c0_215, %c0_216], %534 {strides = array<i32>} : memref<8x2x8x8xf32, #tpu.memory_space<vmem>>, vector<1x1x8x8xf32>,
    %535 = vector.extract_strided_slice %502 {offsets = [0, 32], sizes = [8, 8], strides = [1, 1]} : vector<8x128xf32> to vector<8x8xf32>
    %c4_217 = arith.constant 4 : index
    %c0_218 = arith.constant 0 : index
    %c0_219 = arith.constant 0 : index
    %c0_220 = arith.constant 0 : index
    %536 = vector.load %arg3[%c4_217, %c0_218, %c0_219, %c0_220] : memref<8x2x8x8xf32, #tpu.memory_space<vmem>>, vector<1x1x8x8xf32>
    %537 = vector.shape_cast %536 : vector<1x1x8x8xf32> to vector<8x8xf32>
    %538 = vector.shape_cast %535 : vector<8x8xf32> to vector<1x1x8x8xf32>
    tpu.vector_store %arg3[%c4_217, %c0_218, %c0_219, %c0_220], %538 {strides = array<i32>} : memref<8x2x8x8xf32, #tpu.memory_space<vmem>>, vector<1x1x8x8xf32>,
    %539 = vector.extract_strided_slice %502 {offsets = [0, 96], sizes = [8, 8], strides = [1, 1]} : vector<8x128xf32> to vector<8x8xf32>
    %c4_221 = arith.constant 4 : index
    %c1_222 = arith.constant 1 : index
    %c0_223 = arith.constant 0 : index
    %c0_224 = arith.constant 0 : index
    %540 = vector.load %arg3[%c4_221, %c1_222, %c0_223, %c0_224] : memref<8x2x8x8xf32, #tpu.memory_space<vmem>>, vector<1x1x8x8xf32>
    %541 = vector.shape_cast %540 : vector<1x1x8x8xf32> to vector<8x8xf32>
    %542 = vector.shape_cast %539 : vector<8x8xf32> to vector<1x1x8x8xf32>
    tpu.vector_store %arg3[%c4_221, %c1_222, %c0_223, %c0_224], %542 {strides = array<i32>} : memref<8x2x8x8xf32, #tpu.memory_space<vmem>>, vector<1x1x8x8xf32>,
    %543 = vector.extract_strided_slice %502 {offsets = [0, 40], sizes = [8, 8], strides = [1, 1]} : vector<8x128xf32> to vector<8x8xf32>
    %c5_225 = arith.constant 5 : index
    %c0_226 = arith.constant 0 : index
    %c0_227 = arith.constant 0 : index
    %c0_228 = arith.constant 0 : index
    %544 = vector.load %arg3[%c5_225, %c0_226, %c0_227, %c0_228] : memref<8x2x8x8xf32, #tpu.memory_space<vmem>>, vector<1x1x8x8xf32>
    %545 = vector.shape_cast %544 : vector<1x1x8x8xf32> to vector<8x8xf32>
    %546 = vector.shape_cast %543 : vector<8x8xf32> to vector<1x1x8x8xf32>
    tpu.vector_store %arg3[%c5_225, %c0_226, %c0_227, %c0_228], %546 {strides = array<i32>} : memref<8x2x8x8xf32, #tpu.memory_space<vmem>>, vector<1x1x8x8xf32>,
    %547 = vector.extract_strided_slice %502 {offsets = [0, 104], sizes = [8, 8], strides = [1, 1]} : vector<8x128xf32> to vector<8x8xf32>
    %c5_229 = arith.constant 5 : index
    %c1_230 = arith.constant 1 : index
    %c0_231 = arith.constant 0 : index
    %c0_232 = arith.constant 0 : index
    %548 = vector.load %arg3[%c5_229, %c1_230, %c0_231, %c0_232] : memref<8x2x8x8xf32, #tpu.memory_space<vmem>>, vector<1x1x8x8xf32>
    %549 = vector.shape_cast %548 : vector<1x1x8x8xf32> to vector<8x8xf32>
    %550 = vector.shape_cast %547 : vector<8x8xf32> to vector<1x1x8x8xf32>
    tpu.vector_store %arg3[%c5_229, %c1_230, %c0_231, %c0_232], %550 {strides = array<i32>} : memref<8x2x8x8xf32, #tpu.memory_space<vmem>>, vector<1x1x8x8xf32>,
    %551 = vector.extract_strided_slice %502 {offsets = [0, 48], sizes = [8, 8], strides = [1, 1]} : vector<8x128xf32> to vector<8x8xf32>
    %c6_233 = arith.constant 6 : index
    %c0_234 = arith.constant 0 : index
    %c0_235 = arith.constant 0 : index
    %c0_236 = arith.constant 0 : index
    %552 = vector.load %arg3[%c6_233, %c0_234, %c0_235, %c0_236] : memref<8x2x8x8xf32, #tpu.memory_space<vmem>>, vector<1x1x8x8xf32>
    %553 = vector.shape_cast %552 : vector<1x1x8x8xf32> to vector<8x8xf32>
    %554 = vector.shape_cast %551 : vector<8x8xf32> to vector<1x1x8x8xf32>
    tpu.vector_store %arg3[%c6_233, %c0_234, %c0_235, %c0_236], %554 {strides = array<i32>} : memref<8x2x8x8xf32, #tpu.memory_space<vmem>>, vector<1x1x8x8xf32>,
    %555 = vector.extract_strided_slice %502 {offsets = [0, 112], sizes = [8, 8], strides = [1, 1]} : vector<8x128xf32> to vector<8x8xf32>
    %c6_237 = arith.constant 6 : index
    %c1_238 = arith.constant 1 : index
    %c0_239 = arith.constant 0 : index
    %c0_240 = arith.constant 0 : index
    %556 = vector.load %arg3[%c6_237, %c1_238, %c0_239, %c0_240] : memref<8x2x8x8xf32, #tpu.memory_space<vmem>>, vector<1x1x8x8xf32>
    %557 = vector.shape_cast %556 : vector<1x1x8x8xf32> to vector<8x8xf32>
    %558 = vector.shape_cast %555 : vector<8x8xf32> to vector<1x1x8x8xf32>
    tpu.vector_store %arg3[%c6_237, %c1_238, %c0_239, %c0_240], %558 {strides = array<i32>} : memref<8x2x8x8xf32, #tpu.memory_space<vmem>>, vector<1x1x8x8xf32>,
    %559 = vector.extract_strided_slice %502 {offsets = [0, 56], sizes = [8, 8], strides = [1, 1]} : vector<8x128xf32> to vector<8x8xf32>
    %c7_241 = arith.constant 7 : index
    %c0_242 = arith.constant 0 : index
    %c0_243 = arith.constant 0 : index
    %c0_244 = arith.constant 0 : index
    %560 = vector.load %arg3[%c7_241, %c0_242, %c0_243, %c0_244] : memref<8x2x8x8xf32, #tpu.memory_space<vmem>>, vector<1x1x8x8xf32>
    %561 = vector.shape_cast %560 : vector<1x1x8x8xf32> to vector<8x8xf32>
    %562 = vector.shape_cast %559 : vector<8x8xf32> to vector<1x1x8x8xf32>
    tpu.vector_store %arg3[%c7_241, %c0_242, %c0_243, %c0_244], %562 {strides = array<i32>} : memref<8x2x8x8xf32, #tpu.memory_space<vmem>>, vector<1x1x8x8xf32>,
    %563 = vector.extract_strided_slice %502 {offsets = [0, 120], sizes = [8, 8], strides = [1, 1]} : vector<8x128xf32> to vector<8x8xf32>
    %c7_245 = arith.constant 7 : index
    %c1_246 = arith.constant 1 : index
    %c0_247 = arith.constant 0 : index
    %c0_248 = arith.constant 0 : index
    %564 = vector.load %arg3[%c7_245, %c1_246, %c0_247, %c0_248] : memref<8x2x8x8xf32, #tpu.memory_space<vmem>>, vector<1x1x8x8xf32>
    %565 = vector.shape_cast %564 : vector<1x1x8x8xf32> to vector<8x8xf32>
    %566 = vector.shape_cast %563 : vector<8x8xf32> to vector<1x1x8x8xf32>
    tpu.vector_store %arg3[%c7_245, %c1_246, %c0_247, %c0_248], %566 {strides = array<i32>} : memref<8x2x8x8xf32, #tpu.memory_space<vmem>>, vector<1x1x8x8xf32>,
    return
  }
  func.func @transform_0(%arg0: i32) -> (i32, i32) {
    %c0_i32 = arith.constant 0 : i32
    %c0_i32_0 = arith.constant 0 : i32
    %c0_i32_1 = arith.constant 0 : i32
    return %c0_i32, %c0_i32_0 : i32, i32
  }
  func.func @transform_1(%arg0: i32) -> (i32, i32, i32) {
    %c0_i32 = arith.constant 0 : i32
    %c0_i32_0 = arith.constant 0 : i32
    %c0_i32_1 = arith.constant 0 : i32
    %c0_i32_2 = arith.constant 0 : i32
    return %c0_i32, %c0_i32_0, %c0_i32_1 : i32, i32, i32
  }
  func.func @transform_2(%arg0: i32) -> (i32, i32, i32, i32) {
    %c0_i32 = arith.constant 0 : i32
    %c0_i32_0 = arith.constant 0 : i32
    %c0_i32_1 = arith.constant 0 : i32
    %c0_i32_2 = arith.constant 0 : i32
    %c0_i32_3 = arith.constant 0 : i32
    return %c0_i32, %c0_i32_0, %c0_i32_1, %c0_i32_2 : i32, i32, i32, i32
  }
}

</mosaic_0001>

<llo_original>
// kernel: forward.1
$region0: #{forward.1}
  #allocation0 [shape = 'u32[]', space=smem, size = 0x4, offset = 0x4, fixed_abs, tag = 'smem constant byte address 0x4 - core index']
  #allocation1 [shape = 'u32[144,128]{1,0:T(1,128)}', space=vmem, size = 0x12000, scoped, tag = 'internal scratch']
  %s0 = inlined_call_operand.vmem [shape: f32[1,128], index: 0, kind: input, shape index: {}]
  %s1 = inlined_call_operand.hbm [shape: f32[89,8,128], index: 1, kind: input, shape index: {}]
  %s2 = inlined_call_operand.hbm [shape: f32[8,2,8,8], index: 2, kind: output, shape index: {}]
  %s3 = sld [smem:[#allocation0]]
  $region22: #{forward.1} parent=0
    _
  %s5 = ssub.s32 1, %s3
  %s6 = scalar_select 0, %s5, %s3
  $region1: #{forward.1} parent=0
    #allocation2 [shape = 'u8[364544]{0}', space=vmem, size = 0x59000, scoped, tag = 'input window, operand 1, single buffered']
    #allocation3 [shape = 's32[1]{0}', space=sflag, size = 0x4, scoped, tag = 'scoped memory for forward.1']
    #allocation4 [shape = 's32[1]{0}', space=sflag, size = 0x4, scoped, tag = 'scoped memory for forward.1']
    #allocation5 [shape = 'u8[65536]{0}', space=vmem, size = 0x10000, scoped, tag = 'output window, operand 0, single buffered']
    %7 = vsyncpa [#allocation3], 0
    %8 = vsyncpa [#allocation4], 0
    // Predicated region
    $region2: #{forward.1} parent=1 // pred_check
      _
    $region3: #{forward.1} parent=1 // pred_check_branch
      %10 = sbr.rel (0) target = $region5
    $region4: #{forward.1} parent=1 // pred_region
      _
    $region5: #{forward.1} parent=1 // pred_fallthru
      _
    // Predicated region
    $region6: #{forward.1} parent=1 // pred_check
      _
    $region7: #{forward.1} parent=1 // pred_check_branch
      %12 = sbr.rel (0) target = $region9
    $region8: #{forward.1} parent=1 // pred_region
      %s14 = ssub.s32 11392, 11392
      %15 = vsyncadd [#allocation3], %s14
      %s16 = sshll.u32 [#allocation2], 4
      %s17 = int_to_ptr.vmem [resolvable:$true] %s16
      %22 = dma.hbm_to_vmem [thread:$0]  %s1, 11392, %s17, [#allocation3], 128, 128, 8
    $region9: #{forward.1} parent=1 // pred_fallthru
      _
    // Predicated region
    $region10: #{forward.1} parent=1 // pred_check
      _
    $region11: #{forward.1} parent=1 // pred_check_branch
      %24 = sbr.rel (0) target = $region13
    $region12: #{forward.1} parent=1 // pred_region
      %25 = dma.done [#allocation3], 11392
    $region13: #{forward.1} parent=1 // pred_fallthru
      _
    %v26 = vld [vmem:[%s0] sm:$0x1]
    %27 = vrot.lane.b32.xlu0 %v26, 2
    %v28 = vpop.permute.xlu0 %27
    %v29 = vld [vmem:[#allocation2] sm:$0xff]
    %v30 = vlaneseq
    %v31 = vshrl.u32 %v30, 7
    %v32 = vsub.s32 0, %v31
    %v33 = vrot.slane %v28, %v32
    %v34 = vmul.f32 %v29, %v33
    %35 = vrot.lane.b32.xlu0 %v26, 1
    %v36 = vpop.permute.xlu0 %35
    %s37 = scalar_lea.vmem [#allocation2], 8
    %v38 = vld [vmem:[%s37] sm:$0xff]
    %v39 = vlaneseq
    %v40 = vshrl.u32 %v39, 7
    %v41 = vsub.s32 0, %v40
    %v42 = vrot.slane %v36, %v41
    %v43 = vmul.f32 %v38, %v42
    %v44 = vadd.f32 %v34, %v43
    %s45 = scalar_lea.vmem [#allocation2], 16
    %v46 = vld [vmem:[%s45] sm:$0xff]
    %v48 = vlaneseq
    %v49 = vshrl.u32 %v48, 7
    %v50 = vsub.s32 0, %v49
    %v51 = vrot.slane %v26, %v50
    %v53 = vmul.f32 %v46, %v51
    %v54 = vadd.f32 %v44, %v53
    %s55 = scalar_lea.vmem [#allocation2], 24
    %v56 = vld [vmem:[%s55] sm:$0xff]
    %v57 = vadd.f32 %v54, %v56
    %v58 = vtanh.pop %v57
    %s59 = scalar_lea.vmem [#allocation2], 32
    %v60 = vld [vmem:[%s59] sm:$0xff]
    %s61 = scalar_lea.vmem [#allocation2], 40
    %v62 = vld [vmem:[%s61] sm:$0xff]
    %v63 = vmul.f32 %v58, %v60
    %v64 = vadd.f32 %v63, %v62
    %65 = vrot.lane.b32.xlu0 %v64, 2
    %v66 = vpop.permute.xlu0 %65
    %s67 = scalar_lea.vmem [#allocation2], 48
    %v68 = vld [vmem:[%s67] sm:$0xff]
    %v69 = vlaneseq
    %v70 = vshrl.u32 %v69, 7
    %v71 = vsub.s32 0, %v70
    %v72 = vrot.slane %v66, %v71
    %v73 = vmul.f32 %v68, %v72
    %s74 = scalar_lea.vmem [#allocation2], 56
    %v75 = vld [vmem:[%s74] sm:$0xff]
    %v76 = vlaneseq
    %v77 = vshrl.u32 %v76, 7
    %v78 = vsub.s32 1, %v77
    %v79 = vrot.slane %v66, %v78
    %v80 = vmul.f32 %v75, %v79
    %v81 = vadd.f32 %v73, %v80
    %s82 = scalar_lea.vmem [#allocation2], 64
    %v83 = vld [vmem:[%s82] sm:$0xff]
    %v84 = vlaneseq
    %v85 = vshrl.u32 %v84, 7
    %v86 = vsub.s32 2, %v85
    %v87 = vrot.slane %v66, %v86
    %v88 = vmul.f32 %v83, %v87
    %v89 = vadd.f32 %v81, %v88
    %s90 = scalar_lea.vmem [#allocation2], 72
    %v91 = vld [vmem:[%s90] sm:$0xff]
    %v92 = vlaneseq
    %v93 = vshrl.u32 %v92, 7
    %v94 = vsub.s32 3, %v93
    %v95 = vrot.slane %v66, %v94
    %v96 = vmul.f32 %v91, %v95
    %v97 = vadd.f32 %v89, %v96
    %s98 = scalar_lea.vmem [#allocation2], 80
    %v99 = vld [vmem:[%s98] sm:$0xff]
    %v100 = vlaneseq
    %v101 = vshrl.u32 %v100, 7
    %v102 = vsub.s32 4, %v101
    %v103 = vrot.slane %v66, %v102
    %v104 = vmul.f32 %v99, %v103
    %v105 = vadd.f32 %v97, %v104
    %s106 = scalar_lea.vmem [#allocation2], 88
    %v107 = vld [vmem:[%s106] sm:$0xff]
    %v108 = vlaneseq
    %v109 = vshrl.u32 %v108, 7
    %v110 = vsub.s32 5, %v109
    %v111 = vrot.slane %v66, %v110
    %v112 = vmul.f32 %v107, %v111
    %v113 = vadd.f32 %v105, %v112
    %s114 = scalar_lea.vmem [#allocation2], 96
    %v115 = vld [vmem:[%s114] sm:$0xff]
    %v116 = vlaneseq
    %v117 = vshrl.u32 %v116, 7
    %v118 = vsub.s32 6, %v117
    %v119 = vrot.slane %v66, %v118
    %v120 = vmul.f32 %v115, %v119
    %v121 = vadd.f32 %v113, %v120
    %s122 = scalar_lea.vmem [#allocation2], 104
    %v123 = vld [vmem:[%s122] sm:$0xff]
    %v124 = vlaneseq
    %v125 = vshrl.u32 %v124, 7
    %v126 = vsub.s32 7, %v125
    %v127 = vrot.slane %v66, %v126
    %v128 = vmul.f32 %v123, %v127
    %v129 = vadd.f32 %v121, %v128
    %130 = vrot.lane.b32.xlu0 %v64, 1
    %v131 = vpop.permute.xlu0 %130
    %s132 = scalar_lea.vmem [#allocation2], 112
    %v133 = vld [vmem:[%s132] sm:$0xff]
    %v134 = vlaneseq
    %v135 = vshrl.u32 %v134, 7
    %v136 = vsub.s32 0, %v135
    %v137 = vrot.slane %v131, %v136
    %v138 = vmul.f32 %v133, %v137
    %v139 = vadd.f32 %v129, %v138
    %s140 = scalar_lea.vmem [#allocation2], 120
    %v141 = vld [vmem:[%s140] sm:$0xff]
    %v142 = vlaneseq
    %v143 = vshrl.u32 %v142, 7
    %v144 = vsub.s32 1, %v143
    %v145 = vrot.slane %v131, %v144
    %v146 = vmul.f32 %v141, %v145
    %v147 = vadd.f32 %v139, %v146
    %s148 = scalar_lea.vmem [#allocation2], 128
    %v149 = vld [vmem:[%s148] sm:$0xff]
    %v150 = vlaneseq
    %v151 = vshrl.u32 %v150, 7
    %v152 = vsub.s32 2, %v151
    %v153 = vrot.slane %v131, %v152
    %v154 = vmul.f32 %v149, %v153
    %v155 = vadd.f32 %v147, %v154
    %s156 = scalar_lea.vmem [#allocation2], 136
    %v157 = vld [vmem:[%s156] sm:$0xff]
    %v158 = vlaneseq
    %v159 = vshrl.u32 %v158, 7
    %v160 = vsub.s32 3, %v159
    %v161 = vrot.slane %v131, %v160
    %v162 = vmul.f32 %v157, %v161
    %v163 = vadd.f32 %v155, %v162
    %s164 = scalar_lea.vmem [#allocation2], 144
    %v165 = vld [vmem:[%s164] sm:$0xff]
    %v166 = vlaneseq
    %v167 = vshrl.u32 %v166, 7
    %v168 = vsub.s32 4, %v167
    %v169 = vrot.slane %v131, %v168
    %v170 = vmul.f32 %v165, %v169
    %v171 = vadd.f32 %v163, %v170
    %s172 = scalar_lea.vmem [#allocation2], 152
    %v173 = vld [vmem:[%s172] sm:$0xff]
    %v174 = vlaneseq
    %v175 = vshrl.u32 %v174, 7
    %v176 = vsub.s32 5, %v175
    %v177 = vrot.slane %v131, %v176
    %v178 = vmul.f32 %v173, %v177
    %v179 = vadd.f32 %v171, %v178
    %s180 = scalar_lea.vmem [#allocation2], 160
    %v181 = vld [vmem:[%s180] sm:$0xff]
    %v182 = vlaneseq
    %v183 = vshrl.u32 %v182, 7
    %v184 = vsub.s32 6, %v183
    %v185 = vrot.slane %v131, %v184
    %v186 = vmul.f32 %v181, %v185
    %v187 = vadd.f32 %v179, %v186
    %s188 = scalar_lea.vmem [#allocation2], 168
    %v189 = vld [vmem:[%s188] sm:$0xff]
    %v190 = vlaneseq
    %v191 = vshrl.u32 %v190, 7
    %v192 = vsub.s32 7, %v191
    %v193 = vrot.slane %v131, %v192
    %v194 = vmul.f32 %v189, %v193
    %v195 = vadd.f32 %v187, %v194
    %s196 = scalar_lea.vmem [#allocation2], 176
    %v197 = vld [vmem:[%s196] sm:$0xff]
    %v198 = vlaneseq
    %v199 = vshrl.u32 %v198, 7
    %v200 = vsub.s32 0, %v199
    %v201 = vrot.slane %v64, %v200
    %v202 = vmul.f32 %v197, %v201
    %v203 = vadd.f32 %v195, %v202
    %s204 = scalar_lea.vmem [#allocation2], 184
    %v205 = vld [vmem:[%s204] sm:$0xff]
    %v206 = vlaneseq
    %v207 = vshrl.u32 %v206, 7
    %v208 = vsub.s32 1, %v207
    %v209 = vrot.slane %v64, %v208
    %v210 = vmul.f32 %v205, %v209
    %v211 = vadd.f32 %v203, %v210
    %s212 = scalar_lea.vmem [#allocation2], 192
    %v213 = vld [vmem:[%s212] sm:$0xff]
    %v214 = vlaneseq
    %v215 = vshrl.u32 %v214, 7
    %v216 = vsub.s32 2, %v215
    %v217 = vrot.slane %v64, %v216
    %v218 = vmul.f32 %v213, %v217
    %v219 = vadd.f32 %v211, %v218
    %s220 = scalar_lea.vmem [#allocation2], 200
    %v221 = vld [vmem:[%s220] sm:$0xff]
    %v222 = vlaneseq
    %v223 = vshrl.u32 %v222, 7
    %v224 = vsub.s32 3, %v223
    %v225 = vrot.slane %v64, %v224
    %v226 = vmul.f32 %v221, %v225
    %v227 = vadd.f32 %v219, %v226
    %s228 = scalar_lea.vmem [#allocation2], 208
    %v229 = vld [vmem:[%s228] sm:$0xff]
    %v230 = vlaneseq
    %v231 = vshrl.u32 %v230, 7
    %v232 = vsub.s32 4, %v231
    %v233 = vrot.slane %v64, %v232
    %v234 = vmul.f32 %v229, %v233
    %v235 = vadd.f32 %v227, %v234
    %s236 = scalar_lea.vmem [#allocation2], 216
    %v237 = vld [vmem:[%s236] sm:$0xff]
    %v238 = vlaneseq
    %v239 = vshrl.u32 %v238, 7
    %v240 = vsub.s32 5, %v239
    %v241 = vrot.slane %v64, %v240
    %v242 = vmul.f32 %v237, %v241
    %v243 = vadd.f32 %v235, %v242
    %s244 = scalar_lea.vmem [#allocation2], 224
    %v245 = vld [vmem:[%s244] sm:$0xff]
    %v246 = vlaneseq
    %v247 = vshrl.u32 %v246, 7
    %v248 = vsub.s32 6, %v247
    %v249 = vrot.slane %v64, %v248
    %v250 = vmul.f32 %v245, %v249
    %v251 = vadd.f32 %v243, %v250
    %s252 = scalar_lea.vmem [#allocation2], 232
    %v253 = vld [vmem:[%s252] sm:$0xff]
    %v254 = vlaneseq
    %v255 = vshrl.u32 %v254, 7
    %v256 = vsub.s32 7, %v255
    %v257 = vrot.slane %v64, %v256
    %v258 = vmul.f32 %v253, %v257
    %v259 = vadd.f32 %v251, %v258
    %s260 = scalar_lea.vmem [#allocation2], 240
    %v261 = vld [vmem:[%s260] sm:$0xff]
    %v262 = vadd.f32 %v259, %v261
    %v263 = vtanh.pop %v262
    %s264 = scalar_lea.vmem [#allocation2], 248
    %v265 = vld [vmem:[%s264] sm:$0xff]
    %s266 = scalar_lea.vmem [#allocation2], 256
    %v267 = vld [vmem:[%s266] sm:$0xff]
    %v268 = vmul.f32 %v263, %v265
    %v269 = vadd.f32 %v268, %v267
    %s270 = scalar_lea.vmem [#allocation2], 264
    %v271 = vld [vmem:[%s270] sm:$0xff]
    %v272 = vmul.f32 %v271, %v51
    %s273 = scalar_lea.vmem [#allocation2], 272
    %v274 = vld [vmem:[%s273] sm:$0xff]
    %v275 = vadd.f32 %v272, %v274
    %v276 = vadd.f32 %v269, %v275
    %v277 = vtanh.pop %v276
    %278 = vrot.lane.b32.xlu0 %v277, 4
    %v279 = vpop.permute.xlu0 %278
    %s280 = scalar_lea.vmem [#allocation2], 280
    %v281 = vld [vmem:[%s280] sm:$0xff]
    %v282 = vlaneseq
    %v283 = vshrl.u32 %v282, 7
    %v284 = vsub.s32 0, %v283
    %v285 = vrot.slane %v279, %v284
    %v286 = vmul.f32 %v281, %v285
    %s287 = scalar_lea.vmem [#allocation2], 288
    %v288 = vld [vmem:[%s287] sm:$0xff]
    %v289 = vlaneseq
    %v290 = vshrl.u32 %v289, 7
    %v291 = vsub.s32 1, %v290
    %v292 = vrot.slane %v279, %v291
    %v293 = vmul.f32 %v288, %v292
    %v294 = vadd.f32 %v286, %v293
    %s295 = scalar_lea.vmem [#allocation2], 296
    %v296 = vld [vmem:[%s295] sm:$0xff]
    %v297 = vlaneseq
    %v298 = vshrl.u32 %v297, 7
    %v299 = vsub.s32 2, %v298
    %v300 = vrot.slane %v279, %v299
    %v301 = vmul.f32 %v296, %v300
    %v302 = vadd.f32 %v294, %v301
    %s303 = scalar_lea.vmem [#allocation2], 304
    %v304 = vld [vmem:[%s303] sm:$0xff]
    %v305 = vlaneseq
    %v306 = vshrl.u32 %v305, 7
    %v307 = vsub.s32 3, %v306
    %v308 = vrot.slane %v279, %v307
    %v309 = vmul.f32 %v304, %v308
    %v310 = vadd.f32 %v302, %v309
    %s311 = scalar_lea.vmem [#allocation2], 312
    %v312 = vld [vmem:[%s311] sm:$0xff]
    %v313 = vlaneseq
    %v314 = vshrl.u32 %v313, 7
    %v315 = vsub.s32 4, %v314
    %v316 = vrot.slane %v279, %v315
    %v317 = vmul.f32 %v312, %v316
    %v318 = vadd.f32 %v310, %v317
    %s319 = scalar_lea.vmem [#allocation2], 320
    %v320 = vld [vmem:[%s319] sm:$0xff]
    %v321 = vlaneseq
    %v322 = vshrl.u32 %v321, 7
    %v323 = vsub.s32 5, %v322
    %v324 = vrot.slane %v279, %v323
    %v325 = vmul.f32 %v320, %v324
    %v326 = vadd.f32 %v318, %v325
    %s327 = scalar_lea.vmem [#allocation2], 328
    %v328 = vld [vmem:[%s327] sm:$0xff]
    %v329 = vlaneseq
    %v330 = vshrl.u32 %v329, 7
    %v331 = vsub.s32 6, %v330
    %v332 = vrot.slane %v279, %v331
    %v333 = vmul.f32 %v328, %v332
    %v334 = vadd.f32 %v326, %v333
    %s335 = scalar_lea.vmem [#allocation2], 336
    %v336 = vld [vmem:[%s335] sm:$0xff]
    %v337 = vlaneseq
    %v338 = vshrl.u32 %v337, 7
    %v339 = vsub.s32 7, %v338
    %v340 = vrot.slane %v279, %v339
    %v341 = vmul.f32 %v336, %v340
    %v342 = vadd.f32 %v334, %v341
    %343 = vrot.lane.b32.xlu0 %v277, 2
    %v344 = vpop.permute.xlu0 %343
    %s345 = scalar_lea.vmem [#allocation2], 344
    %v346 = vld [vmem:[%s345] sm:$0xff]
    %v347 = vlaneseq
    %v348 = vshrl.u32 %v347, 7
    %v349 = vsub.s32 0, %v348
    %v350 = vrot.slane %v344, %v349
    %v351 = vmul.f32 %v346, %v350
    %v352 = vadd.f32 %v342, %v351
    %s353 = scalar_lea.vmem [#allocation2], 352
    %v354 = vld [vmem:[%s353] sm:$0xff]
    %v355 = vlaneseq
    %v356 = vshrl.u32 %v355, 7
    %v357 = vsub.s32 1, %v356
    %v358 = vrot.slane %v344, %v357
    %v359 = vmul.f32 %v354, %v358
    %v360 = vadd.f32 %v352, %v359
    %s361 = scalar_lea.vmem [#allocation2], 360
    %v362 = vld [vmem:[%s361] sm:$0xff]
    %v363 = vlaneseq
    %v364 = vshrl.u32 %v363, 7
    %v365 = vsub.s32 2, %v364
    %v366 = vrot.slane %v344, %v365
    %v367 = vmul.f32 %v362, %v366
    %v368 = vadd.f32 %v360, %v367
    %s369 = scalar_lea.vmem [#allocation2], 368
    %v370 = vld [vmem:[%s369] sm:$0xff]
    %v371 = vlaneseq
    %v372 = vshrl.u32 %v371, 7
    %v373 = vsub.s32 3, %v372
    %v374 = vrot.slane %v344, %v373
    %v375 = vmul.f32 %v370, %v374
    %v376 = vadd.f32 %v368, %v375
    %s377 = scalar_lea.vmem [#allocation2], 376
    %v378 = vld [vmem:[%s377] sm:$0xff]
    %v379 = vlaneseq
    %v380 = vshrl.u32 %v379, 7
    %v381 = vsub.s32 4, %v380
    %v382 = vrot.slane %v344, %v381
    %v383 = vmul.f32 %v378, %v382
    %v384 = vadd.f32 %v376, %v383
    %s385 = scalar_lea.vmem [#allocation2], 384
    %v386 = vld [vmem:[%s385] sm:$0xff]
    %v387 = vlaneseq
    %v388 = vshrl.u32 %v387, 7
    %v389 = vsub.s32 5, %v388
    %v390 = vrot.slane %v344, %v389
    %v391 = vmul.f32 %v386, %v390
    %v392 = vadd.f32 %v384, %v391
    %s393 = scalar_lea.vmem [#allocation2], 392
    %v394 = vld [vmem:[%s393] sm:$0xff]
    %v395 = vlaneseq
    %v396 = vshrl.u32 %v395, 7
    %v397 = vsub.s32 6, %v396
    %v398 = vrot.slane %v344, %v397
    %v399 = vmul.f32 %v394, %v398
    %v400 = vadd.f32 %v392, %v399
    %s401 = scalar_lea.vmem [#allocation2], 400
    %v402 = vld [vmem:[%s401] sm:$0xff]
    %v403 = vlaneseq
    %v404 = vshrl.u32 %v403, 7
    %v405 = vsub.s32 7, %v404
    %v406 = vrot.slane %v344, %v405
    %v407 = vmul.f32 %v402, %v406
    %v408 = vadd.f32 %v400, %v407
    %s409 = scalar_lea.vmem [#allocation2], 408
    %v410 = vld [vmem:[%s409] sm:$0xff]
    %v411 = vlaneseq
    %v412 = vshrl.u32 %v411, 7
    %v413 = vsub.s32 0, %v412
    %v414 = vrot.slane %v277, %v413
    %v415 = vmul.f32 %v410, %v414
    %v416 = vadd.f32 %v408, %v415
    %s417 = scalar_lea.vmem [#allocation2], 416
    %v418 = vld [vmem:[%s417] sm:$0xff]
    %v419 = vlaneseq
    %v420 = vshrl.u32 %v419, 7
    %v421 = vsub.s32 1, %v420
    %v422 = vrot.slane %v277, %v421
    %v423 = vmul.f32 %v418, %v422
    %v424 = vadd.f32 %v416, %v423
    %s425 = scalar_lea.vmem [#allocation2], 424
    %v426 = vld [vmem:[%s425] sm:$0xff]
    %v427 = vlaneseq
    %v428 = vshrl.u32 %v427, 7
    %v429 = vsub.s32 2, %v428
    %v430 = vrot.slane %v277, %v429
    %v431 = vmul.f32 %v426, %v430
    %v432 = vadd.f32 %v424, %v431
    %s433 = scalar_lea.vmem [#allocation2], 432
    %v434 = vld [vmem:[%s433] sm:$0xff]
    %v435 = vlaneseq
    %v436 = vshrl.u32 %v435, 7
    %v437 = vsub.s32 3, %v436
    %v438 = vrot.slane %v277, %v437
    %v439 = vmul.f32 %v434, %v438
    %v440 = vadd.f32 %v432, %v439
    %s441 = scalar_lea.vmem [#allocation2], 440
    %v442 = vld [vmem:[%s441] sm:$0xff]
    %v443 = vlaneseq
    %v444 = vshrl.u32 %v443, 7
    %v445 = vsub.s32 4, %v444
    %v446 = vrot.slane %v277, %v445
    %v447 = vmul.f32 %v442, %v446
    %v448 = vadd.f32 %v440, %v447
    %s449 = scalar_lea.vmem [#allocation2], 448
    %v450 = vld [vmem:[%s449] sm:$0xff]
    %v451 = vlaneseq
    %v452 = vshrl.u32 %v451, 7
    %v453 = vsub.s32 5, %v452
    %v454 = vrot.slane %v277, %v453
    %v455 = vmul.f32 %v450, %v454
    %v456 = vadd.f32 %v448, %v455
    %s457 = scalar_lea.vmem [#allocation2], 456
    %v458 = vld [vmem:[%s457] sm:$0xff]
    %v459 = vlaneseq
    %v460 = vshrl.u32 %v459, 7
    %v461 = vsub.s32 6, %v460
    %v462 = vrot.slane %v277, %v461
    %v463 = vmul.f32 %v458, %v462
    %v464 = vadd.f32 %v456, %v463
    %s465 = scalar_lea.vmem [#allocation2], 464
    %v466 = vld [vmem:[%s465] sm:$0xff]
    %v467 = vlaneseq
    %v468 = vshrl.u32 %v467, 7
    %v469 = vsub.s32 7, %v468
    %v470 = vrot.slane %v277, %v469
    %v471 = vmul.f32 %v466, %v470
    %v472 = vadd.f32 %v464, %v471
    %s473 = scalar_lea.vmem [#allocation2], 472
    %v474 = vld [vmem:[%s473] sm:$0xff]
    %v475 = vadd.f32 %v472, %v474
    %v476 = vtanh.pop %v475
    %s477 = scalar_lea.vmem [#allocation2], 480
    %v478 = vld [vmem:[%s477] sm:$0xff]
    %s479 = scalar_lea.vmem [#allocation2], 488
    %v480 = vld [vmem:[%s479] sm:$0xff]
    %v481 = vmul.f32 %v476, %v478
    %v482 = vadd.f32 %v481, %v480
    %483 = vrot.lane.b32.xlu0 %v482, 4
    %v484 = vpop.permute.xlu0 %483
    %s485 = scalar_lea.vmem [#allocation2], 496
    %v486 = vld [vmem:[%s485] sm:$0xff]
    %v487 = vlaneseq
    %v488 = vshrl.u32 %v487, 7
    %v489 = vsub.s32 0, %v488
    %v490 = vrot.slane %v484, %v489
    %v491 = vmul.f32 %v486, %v490
    %s492 = scalar_lea.vmem [#allocation2], 504
    %v493 = vld [vmem:[%s492] sm:$0xff]
    %v494 = vlaneseq
    %v495 = vshrl.u32 %v494, 7
    %v496 = vsub.s32 1, %v495
    %v497 = vrot.slane %v484, %v496
    %v498 = vmul.f32 %v493, %v497
    %v499 = vadd.f32 %v491, %v498
    %s500 = scalar_lea.vmem [#allocation2], 512
    %v501 = vld [vmem:[%s500] sm:$0xff]
    %v502 = vlaneseq
    %v503 = vshrl.u32 %v502, 7
    %v504 = vsub.s32 2, %v503
    %v505 = vrot.slane %v484, %v504
    %v506 = vmul.f32 %v501, %v505
    %v507 = vadd.f32 %v499, %v506
    %s508 = scalar_lea.vmem [#allocation2], 520
    %v509 = vld [vmem:[%s508] sm:$0xff]
    %v510 = vlaneseq
    %v511 = vshrl.u32 %v510, 7
    %v512 = vsub.s32 3, %v511
    %v513 = vrot.slane %v484, %v512
    %v514 = vmul.f32 %v509, %v513
    %v515 = vadd.f32 %v507, %v514
    %s516 = scalar_lea.vmem [#allocation2], 528
    %v517 = vld [vmem:[%s516] sm:$0xff]
    %v518 = vlaneseq
    %v519 = vshrl.u32 %v518, 7
    %v520 = vsub.s32 4, %v519
    %v521 = vrot.slane %v484, %v520
    %v522 = vmul.f32 %v517, %v521
    %v523 = vadd.f32 %v515, %v522
    %s524 = scalar_lea.vmem [#allocation2], 536
    %v525 = vld [vmem:[%s524] sm:$0xff]
    %v526 = vlaneseq
    %v527 = vshrl.u32 %v526, 7
    %v528 = vsub.s32 5, %v527
    %v529 = vrot.slane %v484, %v528
    %v530 = vmul.f32 %v525, %v529
    %v531 = vadd.f32 %v523, %v530
    %s532 = scalar_lea.vmem [#allocation2], 544
    %v533 = vld [vmem:[%s532] sm:$0xff]
    %v534 = vlaneseq
    %v535 = vshrl.u32 %v534, 7
    %v536 = vsub.s32 6, %v535
    %v537 = vrot.slane %v484, %v536
    %v538 = vmul.f32 %v533, %v537
    %v539 = vadd.f32 %v531, %v538
    %s540 = scalar_lea.vmem [#allocation2], 552
    %v541 = vld [vmem:[%s540] sm:$0xff]
    %v542 = vlaneseq
    %v543 = vshrl.u32 %v542, 7
    %v544 = vsub.s32 7, %v543
    %v545 = vrot.slane %v484, %v544
    %v546 = vmul.f32 %v541, %v545
    %v547 = vadd.f32 %v539, %v546
    %548 = vrot.lane.b32.xlu0 %v482, 2
    %v549 = vpop.permute.xlu0 %548
    %s550 = scalar_lea.vmem [#allocation2], 560
    %v551 = vld [vmem:[%s550] sm:$0xff]
    %v552 = vlaneseq
    %v553 = vshrl.u32 %v552, 7
    %v554 = vsub.s32 0, %v553
    %v555 = vrot.slane %v549, %v554
    %v556 = vmul.f32 %v551, %v555
    %v557 = vadd.f32 %v547, %v556
    %s558 = scalar_lea.vmem [#allocation2], 568
    %v559 = vld [vmem:[%s558] sm:$0xff]
    %v560 = vlaneseq
    %v561 = vshrl.u32 %v560, 7
    %v562 = vsub.s32 1, %v561
    %v563 = vrot.slane %v549, %v562
    %v564 = vmul.f32 %v559, %v563
    %v565 = vadd.f32 %v557, %v564
    %s566 = scalar_lea.vmem [#allocation2], 576
    %v567 = vld [vmem:[%s566] sm:$0xff]
    %v568 = vlaneseq
    %v569 = vshrl.u32 %v568, 7
    %v570 = vsub.s32 2, %v569
    %v571 = vrot.slane %v549, %v570
    %v572 = vmul.f32 %v567, %v571
    %v573 = vadd.f32 %v565, %v572
    %s574 = scalar_lea.vmem [#allocation2], 584
    %v575 = vld [vmem:[%s574] sm:$0xff]
    %v576 = vlaneseq
    %v577 = vshrl.u32 %v576, 7
    %v578 = vsub.s32 3, %v577
    %v579 = vrot.slane %v549, %v578
    %v580 = vmul.f32 %v575, %v579
    %v581 = vadd.f32 %v573, %v580
    %s582 = scalar_lea.vmem [#allocation2], 592
    %v583 = vld [vmem:[%s582] sm:$0xff]
    %v584 = vlaneseq
    %v585 = vshrl.u32 %v584, 7
    %v586 = vsub.s32 4, %v585
    %v587 = vrot.slane %v549, %v586
    %v588 = vmul.f32 %v583, %v587
    %v589 = vadd.f32 %v581, %v588
    %s590 = scalar_lea.vmem [#allocation2], 600
    %v591 = vld [vmem:[%s590] sm:$0xff]
    %v592 = vlaneseq
    %v593 = vshrl.u32 %v592, 7
    %v594 = vsub.s32 5, %v593
    %v595 = vrot.slane %v549, %v594
    %v596 = vmul.f32 %v591, %v595
    %v597 = vadd.f32 %v589, %v596
    %s598 = scalar_lea.vmem [#allocation2], 608
    %v599 = vld [vmem:[%s598] sm:$0xff]
    %v600 = vlaneseq
    %v601 = vshrl.u32 %v600, 7
    %v602 = vsub.s32 6, %v601
    %v603 = vrot.slane %v549, %v602
    %v604 = vmul.f32 %v599, %v603
    %v605 = vadd.f32 %v597, %v604
    %s606 = scalar_lea.vmem [#allocation2], 616
    %v607 = vld [vmem:[%s606] sm:$0xff]
    %v608 = vlaneseq
    %v609 = vshrl.u32 %v608, 7
    %v610 = vsub.s32 7, %v609
    %v611 = vrot.slane %v549, %v610
    %v612 = vmul.f32 %v607, %v611
    %v613 = vadd.f32 %v605, %v612
    %s614 = scalar_lea.vmem [#allocation2], 624
    %v615 = vld [vmem:[%s614] sm:$0xff]
    %v616 = vlaneseq
    %v617 = vshrl.u32 %v616, 7
    %v618 = vsub.s32 0, %v617
    %v619 = vrot.slane %v482, %v618
    %v620 = vmul.f32 %v615, %v619
    %v621 = vadd.f32 %v613, %v620
    %s622 = scalar_lea.vmem [#allocation2], 632
    %v623 = vld [vmem:[%s622] sm:$0xff]
    %v624 = vlaneseq
    %v625 = vshrl.u32 %v624, 7
    %v626 = vsub.s32 1, %v625
    %v627 = vrot.slane %v482, %v626
    %v628 = vmul.f32 %v623, %v627
    %v629 = vadd.f32 %v621, %v628
    %s630 = scalar_lea.vmem [#allocation2], 640
    %v631 = vld [vmem:[%s630] sm:$0xff]
    %v632 = vlaneseq
    %v633 = vshrl.u32 %v632, 7
    %v634 = vsub.s32 2, %v633
    %v635 = vrot.slane %v482, %v634
    %v636 = vmul.f32 %v631, %v635
    %v637 = vadd.f32 %v629, %v636
    %s638 = scalar_lea.vmem [#allocation2], 648
    %v639 = vld [vmem:[%s638] sm:$0xff]
    %v640 = vlaneseq
    %v641 = vshrl.u32 %v640, 7
    %v642 = vsub.s32 3, %v641
    %v643 = vrot.slane %v482, %v642
    %v644 = vmul.f32 %v639, %v643
    %v645 = vadd.f32 %v637, %v644
    %s646 = scalar_lea.vmem [#allocation2], 656
    %v647 = vld [vmem:[%s646] sm:$0xff]
    %v648 = vlaneseq
    %v649 = vshrl.u32 %v648, 7
    %v650 = vsub.s32 4, %v649
    %v651 = vrot.slane %v482, %v650
    %v652 = vmul.f32 %v647, %v651
    %v653 = vadd.f32 %v645, %v652
    %s654 = scalar_lea.vmem [#allocation2], 664
    %v655 = vld [vmem:[%s654] sm:$0xff]
    %v656 = vlaneseq
    %v657 = vshrl.u32 %v656, 7
    %v658 = vsub.s32 5, %v657
    %v659 = vrot.slane %v482, %v658
    %v660 = vmul.f32 %v655, %v659
    %v661 = vadd.f32 %v653, %v660
    %s662 = scalar_lea.vmem [#allocation2], 672
    %v663 = vld [vmem:[%s662] sm:$0xff]
    %v664 = vlaneseq
    %v665 = vshrl.u32 %v664, 7
    %v666 = vsub.s32 6, %v665
    %v667 = vrot.slane %v482, %v666
    %v668 = vmul.f32 %v663, %v667
    %v669 = vadd.f32 %v661, %v668
    %s670 = scalar_lea.vmem [#allocation2], 680
    %v671 = vld [vmem:[%s670] sm:$0xff]
    %v672 = vlaneseq
    %v673 = vshrl.u32 %v672, 7
    %v674 = vsub.s32 7, %v673
    %v675 = vrot.slane %v482, %v674
    %v676 = vmul.f32 %v671, %v675
    %v677 = vadd.f32 %v669, %v676
    %s678 = scalar_lea.vmem [#allocation2], 688
    %v679 = vld [vmem:[%s678] sm:$0xff]
    %v680 = vadd.f32 %v677, %v679
    %v681 = vtanh.pop %v680
    %s682 = scalar_lea.vmem [#allocation2], 696
    %v683 = vld [vmem:[%s682] sm:$0xff]
    %s684 = scalar_lea.vmem [#allocation2], 704
    %v685 = vld [vmem:[%s684] sm:$0xff]
    %v686 = vmul.f32 %v681, %v683
    %v687 = vadd.f32 %v686, %v685
    %v688 = vadd.f32 %v687, %v277
    %v689 = vtanh.pop %v688
    %vm690 = vcmask 64512
    %691 = vst.msk [vmem:[#allocation5] sm:$0xff] %vm690, %v689
    %693 = vrot.lane.b32.xlu0 %v689, 64
    %v694 = vpop.permute.xlu0 %693
    %s696 = scalar_lea.vmem [#allocation5], 8
    %697 = vst.msk [vmem:[%s696] sm:$0xff] %vm690, %v694
    %698 = vrot.lane.b32.xlu0 %v689, 120
    %v699 = vpop.permute.xlu0 %698
    %s701 = scalar_lea.vmem [#allocation5], 16
    %702 = vst.msk [vmem:[%s701] sm:$0xff] %vm690, %v699
    %703 = vrot.lane.b32.xlu0 %v689, 56
    %v704 = vpop.permute.xlu0 %703
    %s706 = scalar_lea.vmem [#allocation5], 24
    %707 = vst.msk [vmem:[%s706] sm:$0xff] %vm690, %v704
    %708 = vrot.lane.b32.xlu0 %v689, 112
    %v709 = vpop.permute.xlu0 %708
    %s711 = scalar_lea.vmem [#allocation5], 32
    %712 = vst.msk [vmem:[%s711] sm:$0xff] %vm690, %v709
    %713 = vrot.lane.b32.xlu0 %v689, 48
    %v714 = vpop.permute.xlu0 %713
    %s716 = scalar_lea.vmem [#allocation5], 40
    %717 = vst.msk [vmem:[%s716] sm:$0xff] %vm690, %v714
    %718 = vrot.lane.b32.xlu0 %v689, 104
    %v719 = vpop.permute.xlu0 %718
    %s721 = scalar_lea.vmem [#allocation5], 48
    %722 = vst.msk [vmem:[%s721] sm:$0xff] %vm690, %v719
    %723 = vrot.lane.b32.xlu0 %v689, 40
    %v724 = vpop.permute.xlu0 %723
    %s726 = scalar_lea.vmem [#allocation5], 56
    %727 = vst.msk [vmem:[%s726] sm:$0xff] %vm690, %v724
    %728 = vrot.lane.b32.xlu0 %v689, 96
    %v729 = vpop.permute.xlu0 %728
    %s731 = scalar_lea.vmem [#allocation5], 64
    %732 = vst.msk [vmem:[%s731] sm:$0xff] %vm690, %v729
    %733 = vrot.lane.b32.xlu0 %v689, 32
    %v734 = vpop.permute.xlu0 %733
    %s736 = scalar_lea.vmem [#allocation5], 72
    %737 = vst.msk [vmem:[%s736] sm:$0xff] %vm690, %v734
    %738 = vrot.lane.b32.xlu0 %v689, 88
    %v739 = vpop.permute.xlu0 %738
    %s741 = scalar_lea.vmem [#allocation5], 80
    %742 = vst.msk [vmem:[%s741] sm:$0xff] %vm690, %v739
    %743 = vrot.lane.b32.xlu0 %v689, 24
    %v744 = vpop.permute.xlu0 %743
    %s746 = scalar_lea.vmem [#allocation5], 88
    %747 = vst.msk [vmem:[%s746] sm:$0xff] %vm690, %v744
    %748 = vrot.lane.b32.xlu0 %v689, 80
    %v749 = vpop.permute.xlu0 %748
    %s751 = scalar_lea.vmem [#allocation5], 96
    %752 = vst.msk [vmem:[%s751] sm:$0xff] %vm690, %v749
    %753 = vrot.lane.b32.xlu0 %v689, 16
    %v754 = vpop.permute.xlu0 %753
    %s756 = scalar_lea.vmem [#allocation5], 104
    %757 = vst.msk [vmem:[%s756] sm:$0xff] %vm690, %v754
    %758 = vrot.lane.b32.xlu0 %v689, 72
    %v759 = vpop.permute.xlu0 %758
    %s761 = scalar_lea.vmem [#allocation5], 112
    %762 = vst.msk [vmem:[%s761] sm:$0xff] %vm690, %v759
    %763 = vrot.lane.b32.xlu0 %v689, 8
    %v764 = vpop.permute.xlu0 %763
    %s766 = scalar_lea.vmem [#allocation5], 120
    %767 = vst.msk [vmem:[%s766] sm:$0xff] %vm690, %v764
    // Predicated region
    $region14: #{forward.1} parent=1 // pred_check
      _
    $region15: #{forward.1} parent=1 // pred_check_branch
      %769 = sbr.rel (0) target = $region17
    $region16: #{forward.1} parent=1 // pred_region
      %s771 = ssub.s32 2048, 2048
      %772 = vsyncadd [#allocation4], %s771
      %s773 = sshll.u32 [#allocation5], 4
      %s774 = int_to_ptr.vmem [resolvable:$true] %s773
      %779 = dma.vmem_to_hbm [thread:$0]  %s774, 2048, %s2, [#allocation4], 128, 128, 8
    $region17: #{forward.1} parent=1 // pred_fallthru
      _
    // Predicated region
    $region18: #{forward.1} parent=1 // pred_check
      _
    $region19: #{forward.1} parent=1 // pred_check_branch
      %781 = sbr.rel (0) target = $region21
    $region20: #{forward.1} parent=1 // pred_region
      %782 = dma.done [#allocation4], 2048
    $region21: #{forward.1} parent=1 // pred_fallthru
      _
    %783 = vsyncpa [#allocation3], 1
    %784 = vsyncpa [#allocation4], 1

</llo_original>
